<compile_context>
chip_gen: v7x
topology: tpu7x:2x2x1
jax: 0.10.0
libtpu: 0.0.40
codegen_flags: <defaults>
</compile_context>

<pallas_src>
import math
import jax
import jax.numpy as jnp
from jax import lax
from jax.experimental import pallas as pl
from jax.experimental.pallas import tpu as pltpu

# ----- problem sizes (consistent with norm_shape=[32]) -----
B, S, H = 2, 8, 32          # batch, seq len, num_hiddens
NUM_HEADS = 4
DH = H // NUM_HEADS         # per-head dim
FFN_H = 64                  # ffn_num_hiddens
EPS = 1e-5                  # torch.nn.LayerNorm default
BS = B * S


def encoder_block_kernel(vlen_ref,                    # scalar prefetch (SMEM), (B,) int32
                         x_ref,                       # (B*S, H) f32
                         wqkv_ref,                    # (H, 3H) bf16 (1/sqrt(DH) folded into Wq)
                         wo_ref,                      # (H, H)  bf16
                         w1_ref, b1_ref,              # (H, FFN_H) bf16, (1, FFN_H) f32
                         w2_ref, b2_ref,              # (FFN_H, H) bf16, (1, H) f32
                         g1_ref, be1_ref,             # LN1 gamma/beta, (1, H) f32
                         g2_ref, be2_ref,             # LN2 gamma/beta, (1, H) f32
                         out_ref):                    # (B*S, H) f32
    x = x_ref[...]                                    # f32 residual copy
    xb = x.astype(jnp.bfloat16)

    # ---- fused Q/K/V projection: one (BS,H)@(H,3H) MXU call, f32 accumulate ----
    qkv = jnp.dot(xb, wqkv_ref[...], preferred_element_type=jnp.float32)   # (BS, 3H)
    q = qkv[:, 0 * H:1 * H]
    k = qkv[:, 1 * H:2 * H]
    v = qkv[:, 2 * H:3 * H]

    col = lax.broadcasted_iota(jnp.int32, (S, S), 1)
    neg = jnp.float32(-1e6)                           # d2l masked_softmax fill value

    # ---- per (batch, head) masked softmax attention on tiny (S,S) blocks ----
    per_batch = []
    for b in range(B):                                # static, unrolled
        vl = vlen_ref[b]                              # scalar read from SMEM
        r0 = b * S
        qb, kb, vb = q[r0:r0 + S], k[r0:r0 + S], v[r0:r0 + S]     # (S, H)
        heads = []
        for h in range(NUM_HEADS):                    # static, unrolled
            c0 = h * DH
            qh = qb[:, c0:c0 + DH]                    # (S, DH), scale already folded in
            kh = kb[:, c0:c0 + DH]
            vh = vb[:, c0:c0 + DH]
            scores = jnp.dot(qh, kh.T, preferred_element_type=jnp.float32)   # (S, S)
            scores = jnp.where(col < vl, scores, neg)
            m = jnp.max(scores, axis=-1, keepdims=True)
            p = jnp.exp(scores - m)
            inv = pl.reciprocal(jnp.sum(p, axis=-1, keepdims=True), approx=True)
            attn = p * inv
            heads.append(jnp.dot(attn, vh, preferred_element_type=jnp.float32))
        per_batch.append(jnp.concatenate(heads, axis=-1))                    # (S, H)
    o_cat = jnp.concatenate(per_batch, axis=0)        # (BS, H): concat(heads) per row

    # ---- fused output projection: one (BS,H)@(H,H) MXU call ----
    attn_out = jnp.dot(o_cat.astype(jnp.bfloat16), wo_ref[...],
                       preferred_element_type=jnp.float32)

    # hoisted (1, H) / (1, FFN_H) parameter loads (single vector loads)
    g1, be1 = g1_ref[...], be1_ref[...]
    g2, be2 = g2_ref[...], be2_ref[...]
    b1, b2 = b1_ref[...], b2_ref[...]

    # ---- AddNorm 1 (biased variance == torch.LayerNorm) ----
    # TODO(synk): dropout implemented as identity (eval mode); no RNG path needed.
    y = attn_out + x
    mu = jnp.mean(y, axis=-1, keepdims=True)
    var = jnp.mean((y - mu) ** 2, axis=-1, keepdims=True)
    y = (y - mu) * lax.rsqrt(var + EPS) * g1 + be1

    # ---- PositionWiseFFN (bf16 MXU operands, f32 accumulate / element-wise) ----
    hdn = jnp.dot(y.astype(jnp.bfloat16), w1_ref[...],
                  preferred_element_type=jnp.float32) + b1
    hdn = jnp.maximum(hdn, 0.0)
    f = jnp.dot(hdn.astype(jnp.bfloat16), w2_ref[...],
                preferred_element_type=jnp.float32) + b2

    # ---- AddNorm 2 ----
    z = f + y
    mu2 = jnp.mean(z, axis=-1, keepdims=True)
    var2 = jnp.mean((z - mu2) ** 2, axis=-1, keepdims=True)
    out = (z - mu2) * lax.rsqrt(var2 + EPS) * g2 + be2

    out_ref[...] = out.astype(out_ref.dtype)


def encoder_block(x, valid_lens, params):
    """x: (B, S, H) f32, valid_lens: (B,) int32 -> (B, S, H) f32."""
    wqkv, wo, w1, b1, w2, b2, g1, be1, g2, be2 = params
    x2d = x.reshape(BS, H)                            # flatten batch*seq for the matmuls

    full = lambda shape: pl.BlockSpec(shape, lambda i, vl: tuple(0 for _ in shape))
    grid_spec = pltpu.PrefetchScalarGridSpec(
        num_scalar_prefetch=1,                        # valid_lens -> SMEM
        grid=(1,),                                    # single invocation: no per-step overhead
        in_specs=[
            full((BS, H)),                            # X (whole slab = full-array block)
            full((H, 3 * H)),                         # fused Wqkv (lane-dense)
            full((H, H)),                             # Wo (lane-dense)
            full((H, FFN_H)), full((1, FFN_H)),       # FFN dense1 weight / bias
            full((FFN_H, H)), full((1, H)),           # FFN dense2 weight / bias
            full((1, H)), full((1, H)),               # LN1 gamma, beta
            full((1, H)), full((1, H)),               # LN2 gamma, beta
        ],
        out_specs=full((BS, H)),
    )
    out2d = pl.pallas_call(
        encoder_block_kernel,
        out_shape=jax.ShapeDtypeStruct((BS, H), jnp.float32),
        grid_spec=grid_spec,
        compiler_params=pltpu.CompilerParams(dimension_semantics=("arbitrary",)),
    )(valid_lens, x2d, wqkv, wo, w1, b1, w2, b2, g1, be1, g2, be2)
    return out2d.reshape(B, S, H)


def make_params(key):
    ks = jax.random.split(key, 12)
    std = 0.05
    # Attention projections in "x @ W" orientation (in, out) = (H, H).
    Wq = jax.random.normal(ks[0], (H, H), jnp.float32) * std
    Wk = jax.random.normal(ks[1], (H, H), jnp.float32) * std
    Wv = jax.random.normal(ks[2], (H, H), jnp.float32) * std
    Wo = jax.random.normal(ks[3], (H, H), jnp.float32) * std
    scale = 1.0 / math.sqrt(DH)                       # fold 1/sqrt(d_head) into Wq
    wqkv = jnp.concatenate([Wq * scale, Wk, Wv], axis=1).astype(jnp.bfloat16)  # (H, 3H)
    wo = Wo.astype(jnp.bfloat16)
    # FFN
    w1 = (jax.random.normal(ks[4], (H, FFN_H), jnp.float32) * std).astype(jnp.bfloat16)
    b1 = jax.random.normal(ks[5], (1, FFN_H), jnp.float32) * std
    w2 = (jax.random.normal(ks[6], (FFN_H, H), jnp.float32) * std).astype(jnp.bfloat16)
    b2 = jax.random.normal(ks[7], (1, H), jnp.float32) * std
    # LayerNorms (f32)
    g1 = jnp.ones((1, H), jnp.float32) + 0.1 * jax.random.normal(ks[8], (1, H), jnp.float32)
    be1 = 0.1 * jax.random.normal(ks[9], (1, H), jnp.float32)
    g2 = jnp.ones((1, H), jnp.float32) + 0.1 * jax.random.normal(ks[10], (1, H), jnp.float32)
    be2 = 0.1 * jax.random.normal(ks[11], (1, H), jnp.float32)
    return (wqkv, wo, w1, b1, w2, b2, g1, be1, g2, be2)


if __name__ == "__main__":
    key = jax.random.PRNGKey(0)
    kx, kp = jax.random.split(key)
    x = jax.random.normal(kx, (B, S, H), jnp.float32)
    valid_lens = jnp.array([5, 8], dtype=jnp.int32)
    params = make_params(kp)

    out = encoder_block(x, valid_lens, params)
    jax.block_until_ready(out)
    assert out.shape == (B, S, H)
    print("KERNEL_OK")
</pallas_src>

<mosaic_0001>
module attributes {stable_mosaic.version = 11 : i64} {
  func.func @encoder_block_kernel(%arg0: i32, %arg1: memref<2xi32, #tpu.memory_space<smem>>, %arg2: memref<16x32xf32, #tpu.memory_space<vmem>>, %arg3: memref<32x96xbf16, #tpu.memory_space<vmem>>, %arg4: memref<32x32xbf16, #tpu.memory_space<vmem>>, %arg5: memref<32x64xbf16, #tpu.memory_space<vmem>>, %arg6: memref<1x64xf32, #tpu.memory_space<vmem>>, %arg7: memref<64x32xbf16, #tpu.memory_space<vmem>>, %arg8: memref<1x32xf32, #tpu.memory_space<vmem>>, %arg9: memref<1x32xf32, #tpu.memory_space<vmem>>, %arg10: memref<1x32xf32, #tpu.memory_space<vmem>>, %arg11: memref<1x32xf32, #tpu.memory_space<vmem>>, %arg12: memref<1x32xf32, #tpu.memory_space<vmem>>, %arg13: memref<16x32xf32, #tpu.memory_space<vmem>>) attributes {dimension_semantics = [#tpu.dimension_semantics<arbitrary>], iteration_bounds = array<i64: 1>, scalar_prefetch = 1 : i64, scratch_operands = 0 : i64, tpu.core_type = #tpu.core_type<tc>, window_params = [{pipeline_mode = #tpu.pipeline_mode<synchronous>, transform_indices = @transform_0, window_bounds = array<i64: 16, 32>}, {pipeline_mode = #tpu.pipeline_mode<synchronous>, transform_indices = @transform_1, window_bounds = array<i64: 32, 96>}, {pipeline_mode = #tpu.pipeline_mode<synchronous>, transform_indices = @transform_2, window_bounds = array<i64: 32, 32>}, {pipeline_mode = #tpu.pipeline_mode<synchronous>, transform_indices = @transform_3, window_bounds = array<i64: 32, 64>}, {pipeline_mode = #tpu.pipeline_mode<synchronous>, transform_indices = @transform_4, window_bounds = array<i64: 1, 64>}, {pipeline_mode = #tpu.pipeline_mode<synchronous>, transform_indices = @transform_5, window_bounds = array<i64: 64, 32>}, {pipeline_mode = #tpu.pipeline_mode<synchronous>, transform_indices = @transform_6, window_bounds = array<i64: 1, 32>}, {pipeline_mode = #tpu.pipeline_mode<synchronous>, transform_indices = @transform_7, window_bounds = array<i64: 1, 32>}, {pipeline_mode = #tpu.pipeline_mode<synchronous>, transform_indices = @transform_8, window_bounds = array<i64: 1, 32>}, {pipeline_mode = #tpu.pipeline_mode<synchronous>, transform_indices = @transform_9, window_bounds = array<i64: 1, 32>}, {pipeline_mode = #tpu.pipeline_mode<synchronous>, transform_indices = @transform_10, window_bounds = array<i64: 1, 32>}, {pipeline_mode = #tpu.pipeline_mode<synchronous>, transform_indices = @transform_11, window_bounds = array<i64: 16, 32>}]} {
    %c0 = arith.constant 0 : index
    %c0_0 = arith.constant 0 : index
    %0 = vector.load %arg2[%c0, %c0_0] : memref<16x32xf32, #tpu.memory_space<vmem>>, vector<16x32xf32>
    %1 = arith.truncf %0 : vector<16x32xf32> to vector<16x32xbf16>
    %c0_1 = arith.constant 0 : index
    %c0_2 = arith.constant 0 : index
    %2 = vector.load %arg3[%c0_1, %c0_2] : memref<32x96xbf16, #tpu.memory_space<vmem>>, vector<32x96xbf16>
    %cst = arith.constant dense<0.000000e+00> : vector<16x96xf32>
    %3 = tpu.matmul %1, %2, %cst {dimension_numbers = #tpu.dot_dimension_numbers<[1], [0], [0], [1], [0, 0, 1, 1], [], []>} : vector<16x32xbf16>, vector<32x96xbf16>, vector<16x96xf32> -> vector<16x96xf32>
    %4 = vector.extract_strided_slice %3 {offsets = [0, 0], sizes = [16, 32], strides = [1, 1]} : vector<16x96xf32> to vector<16x32xf32>
    %5 = vector.extract_strided_slice %3 {offsets = [0, 32], sizes = [16, 32], strides = [1, 1]} : vector<16x96xf32> to vector<16x32xf32>
    %6 = vector.extract_strided_slice %3 {offsets = [0, 64], sizes = [16, 32], strides = [1, 1]} : vector<16x96xf32> to vector<16x32xf32>
    %7 = tpu.iota {dimensions = array<i32: 1>} : vector<8x8xi32>
    %c0_3 = arith.constant 0 : index
    %8 = memref.load %arg1[%c0_3] : memref<2xi32, #tpu.memory_space<smem>>
    %9 = vector.extract_strided_slice %4 {offsets = [0, 0], sizes = [8, 32], strides = [1, 1]} : vector<16x32xf32> to vector<8x32xf32>
    %10 = vector.extract_strided_slice %5 {offsets = [0, 0], sizes = [8, 32], strides = [1, 1]} : vector<16x32xf32> to vector<8x32xf32>
    %11 = vector.extract_strided_slice %6 {offsets = [0, 0], sizes = [8, 32], strides = [1, 1]} : vector<16x32xf32> to vector<8x32xf32>
    %12 = vector.extract_strided_slice %9 {offsets = [0, 0], sizes = [8, 8], strides = [1, 1]} : vector<8x32xf32> to vector<8x8xf32>
    %13 = vector.extract_strided_slice %10 {offsets = [0, 0], sizes = [8, 8], strides = [1, 1]} : vector<8x32xf32> to vector<8x8xf32>
    %14 = vector.extract_strided_slice %11 {offsets = [0, 0], sizes = [8, 8], strides = [1, 1]} : vector<8x32xf32> to vector<8x8xf32>
    %15 = tpu.transpose %13, [1, 0] : vector<8x8xf32> -> vector<8x8xf32>
    %cst_4 = arith.constant dense<0.000000e+00> : vector<8x8xf32>
    %16 = tpu.matmul %12, %15, %cst_4 {dimension_numbers = #tpu.dot_dimension_numbers<[1], [0], [0], [1], [0, 0, 1, 1], [], []>} : vector<8x8xf32>, vector<8x8xf32>, vector<8x8xf32> -> vector<8x8xf32>
    %17 = vector.broadcast %8 : i32 to vector<8x8xi32>
    %18 = arith.cmpi slt, %7, %17 : vector<8x8xi32>
    %cst_5 = arith.constant -1.000000e+06 : f32
    %19 = vector.broadcast %cst_5 : f32 to vector<8x8xf32>
    %20 = arith.select %18, %16, %19 : vector<8x8xi1>, vector<8x8xf32>
    %cst_6 = arith.constant dense<0xFF800000> : vector<8xf32>
    %21 = vector.multi_reduction <maximumf>, %20, %cst_6 [1] : vector<8x8xf32> to vector<8xf32>
    %22 = vector.shape_cast %21 : vector<8xf32> to vector<8x1xf32>
    %23 = vector.broadcast %22 : vector<8x1xf32> to vector<8x8xf32>
    %24 = arith.subf %20, %23 : vector<8x8xf32>
    %25 = math.exp %24 : vector<8x8xf32>
    %cst_7 = arith.constant dense<0.000000e+00> : vector<8xf32>
    %26 = vector.multi_reduction <add>, %25, %cst_7 [1] : vector<8x8xf32> to vector<8xf32>
    %27 = vector.shape_cast %26 : vector<8xf32> to vector<8x1xf32>
    %28 = tpu.reciprocal %27 {approx = true} : vector<8x1xf32> -> vector<8x1xf32>
    %29 = vector.broadcast %28 : vector<8x1xf32> to vector<8x8xf32>
    %30 = arith.mulf %25, %29 : vector<8x8xf32>
    %cst_8 = arith.constant dense<0.000000e+00> : vector<8x8xf32>
    %31 = tpu.matmul %30, %14, %cst_8 {dimension_numbers = #tpu.dot_dimension_numbers<[1], [0], [0], [1], [0, 0, 1, 1], [], []>} : vector<8x8xf32>, vector<8x8xf32>, vector<8x8xf32> -> vector<8x8xf32>
    %32 = vector.extract_strided_slice %9 {offsets = [0, 8], sizes = [8, 8], strides = [1, 1]} : vector<8x32xf32> to vector<8x8xf32>
    %33 = vector.extract_strided_slice %10 {offsets = [0, 8], sizes = [8, 8], strides = [1, 1]} : vector<8x32xf32> to vector<8x8xf32>
    %34 = vector.extract_strided_slice %11 {offsets = [0, 8], sizes = [8, 8], strides = [1, 1]} : vector<8x32xf32> to vector<8x8xf32>
    %35 = tpu.transpose %33, [1, 0] : vector<8x8xf32> -> vector<8x8xf32>
    %cst_9 = arith.constant dense<0.000000e+00> : vector<8x8xf32>
    %36 = tpu.matmul %32, %35, %cst_9 {dimension_numbers = #tpu.dot_dimension_numbers<[1], [0], [0], [1], [0, 0, 1, 1], [], []>} : vector<8x8xf32>, vector<8x8xf32>, vector<8x8xf32> -> vector<8x8xf32>
    %37 = vector.broadcast %8 : i32 to vector<8x8xi32>
    %38 = arith.cmpi slt, %7, %37 : vector<8x8xi32>
    %cst_10 = arith.constant -1.000000e+06 : f32
    %39 = vector.broadcast %cst_10 : f32 to vector<8x8xf32>
    %40 = arith.select %38, %36, %39 : vector<8x8xi1>, vector<8x8xf32>
    %cst_11 = arith.constant dense<0xFF800000> : vector<8xf32>
    %41 = vector.multi_reduction <maximumf>, %40, %cst_11 [1] : vector<8x8xf32> to vector<8xf32>
    %42 = vector.shape_cast %41 : vector<8xf32> to vector<8x1xf32>
    %43 = vector.broadcast %42 : vector<8x1xf32> to vector<8x8xf32>
    %44 = arith.subf %40, %43 : vector<8x8xf32>
    %45 = math.exp %44 : vector<8x8xf32>
    %cst_12 = arith.constant dense<0.000000e+00> : vector<8xf32>
    %46 = vector.multi_reduction <add>, %45, %cst_12 [1] : vector<8x8xf32> to vector<8xf32>
    %47 = vector.shape_cast %46 : vector<8xf32> to vector<8x1xf32>
    %48 = tpu.reciprocal %47 {approx = true} : vector<8x1xf32> -> vector<8x1xf32>
    %49 = vector.broadcast %48 : vector<8x1xf32> to vector<8x8xf32>
    %50 = arith.mulf %45, %49 : vector<8x8xf32>
    %cst_13 = arith.constant dense<0.000000e+00> : vector<8x8xf32>
    %51 = tpu.matmul %50, %34, %cst_13 {dimension_numbers = #tpu.dot_dimension_numbers<[1], [0], [0], [1], [0, 0, 1, 1], [], []>} : vector<8x8xf32>, vector<8x8xf32>, vector<8x8xf32> -> vector<8x8xf32>
    %52 = vector.extract_strided_slice %9 {offsets = [0, 16], sizes = [8, 8], strides = [1, 1]} : vector<8x32xf32> to vector<8x8xf32>
    %53 = vector.extract_strided_slice %10 {offsets = [0, 16], sizes = [8, 8], strides = [1, 1]} : vector<8x32xf32> to vector<8x8xf32>
    %54 = vector.extract_strided_slice %11 {offsets = [0, 16], sizes = [8, 8], strides = [1, 1]} : vector<8x32xf32> to vector<8x8xf32>
    %55 = tpu.transpose %53, [1, 0] : vector<8x8xf32> -> vector<8x8xf32>
    %cst_14 = arith.constant dense<0.000000e+00> : vector<8x8xf32>
    %56 = tpu.matmul %52, %55, %cst_14 {dimension_numbers = #tpu.dot_dimension_numbers<[1], [0], [0], [1], [0, 0, 1, 1], [], []>} : vector<8x8xf32>, vector<8x8xf32>, vector<8x8xf32> -> vector<8x8xf32>
    %57 = vector.broadcast %8 : i32 to vector<8x8xi32>
    %58 = arith.cmpi slt, %7, %57 : vector<8x8xi32>
    %cst_15 = arith.constant -1.000000e+06 : f32
    %59 = vector.broadcast %cst_15 : f32 to vector<8x8xf32>
    %60 = arith.select %58, %56, %59 : vector<8x8xi1>, vector<8x8xf32>
    %cst_16 = arith.constant dense<0xFF800000> : vector<8xf32>
    %61 = vector.multi_reduction <maximumf>, %60, %cst_16 [1] : vector<8x8xf32> to vector<8xf32>
    %62 = vector.shape_cast %61 : vector<8xf32> to vector<8x1xf32>
    %63 = vector.broadcast %62 : vector<8x1xf32> to vector<8x8xf32>
    %64 = arith.subf %60, %63 : vector<8x8xf32>
    %65 = math.exp %64 : vector<8x8xf32>
    %cst_17 = arith.constant dense<0.000000e+00> : vector<8xf32>
    %66 = vector.multi_reduction <add>, %65, %cst_17 [1] : vector<8x8xf32> to vector<8xf32>
    %67 = vector.shape_cast %66 : vector<8xf32> to vector<8x1xf32>
    %68 = tpu.reciprocal %67 {approx = true} : vector<8x1xf32> -> vector<8x1xf32>
    %69 = vector.broadcast %68 : vector<8x1xf32> to vector<8x8xf32>
    %70 = arith.mulf %65, %69 : vector<8x8xf32>
    %cst_18 = arith.constant dense<0.000000e+00> : vector<8x8xf32>
    %71 = tpu.matmul %70, %54, %cst_18 {dimension_numbers = #tpu.dot_dimension_numbers<[1], [0], [0], [1], [0, 0, 1, 1], [], []>} : vector<8x8xf32>, vector<8x8xf32>, vector<8x8xf32> -> vector<8x8xf32>
    %72 = vector.extract_strided_slice %9 {offsets = [0, 24], sizes = [8, 8], strides = [1, 1]} : vector<8x32xf32> to vector<8x8xf32>
    %73 = vector.extract_strided_slice %10 {offsets = [0, 24], sizes = [8, 8], strides = [1, 1]} : vector<8x32xf32> to vector<8x8xf32>
    %74 = vector.extract_strided_slice %11 {offsets = [0, 24], sizes = [8, 8], strides = [1, 1]} : vector<8x32xf32> to vector<8x8xf32>
    %75 = tpu.transpose %73, [1, 0] : vector<8x8xf32> -> vector<8x8xf32>
    %cst_19 = arith.constant dense<0.000000e+00> : vector<8x8xf32>
    %76 = tpu.matmul %72, %75, %cst_19 {dimension_numbers = #tpu.dot_dimension_numbers<[1], [0], [0], [1], [0, 0, 1, 1], [], []>} : vector<8x8xf32>, vector<8x8xf32>, vector<8x8xf32> -> vector<8x8xf32>
    %77 = vector.broadcast %8 : i32 to vector<8x8xi32>
    %78 = arith.cmpi slt, %7, %77 : vector<8x8xi32>
    %cst_20 = arith.constant -1.000000e+06 : f32
    %79 = vector.broadcast %cst_20 : f32 to vector<8x8xf32>
    %80 = arith.select %78, %76, %79 : vector<8x8xi1>, vector<8x8xf32>
    %cst_21 = arith.constant dense<0xFF800000> : vector<8xf32>
    %81 = vector.multi_reduction <maximumf>, %80, %cst_21 [1] : vector<8x8xf32> to vector<8xf32>
    %82 = vector.shape_cast %81 : vector<8xf32> to vector<8x1xf32>
    %83 = vector.broadcast %82 : vector<8x1xf32> to vector<8x8xf32>
    %84 = arith.subf %80, %83 : vector<8x8xf32>
    %85 = math.exp %84 : vector<8x8xf32>
    %cst_22 = arith.constant dense<0.000000e+00> : vector<8xf32>
    %86 = vector.multi_reduction <add>, %85, %cst_22 [1] : vector<8x8xf32> to vector<8xf32>
    %87 = vector.shape_cast %86 : vector<8xf32> to vector<8x1xf32>
    %88 = tpu.reciprocal %87 {approx = true} : vector<8x1xf32> -> vector<8x1xf32>
    %89 = vector.broadcast %88 : vector<8x1xf32> to vector<8x8xf32>
    %90 = arith.mulf %85, %89 : vector<8x8xf32>
    %cst_23 = arith.constant dense<0.000000e+00> : vector<8x8xf32>
    %91 = tpu.matmul %90, %74, %cst_23 {dimension_numbers = #tpu.dot_dimension_numbers<[1], [0], [0], [1], [0, 0, 1, 1], [], []>} : vector<8x8xf32>, vector<8x8xf32>, vector<8x8xf32> -> vector<8x8xf32>
    %92 = tpu.concatenate %31, %51, %71, %91 in 1 : vector<8x8xf32>, vector<8x8xf32>, vector<8x8xf32>, vector<8x8xf32> -> vector<8x32xf32>
    %c1 = arith.constant 1 : index
    %93 = memref.load %arg1[%c1] : memref<2xi32, #tpu.memory_space<smem>>
    %94 = vector.extract_strided_slice %4 {offsets = [8, 0], sizes = [8, 32], strides = [1, 1]} : vector<16x32xf32> to vector<8x32xf32>
    %95 = vector.extract_strided_slice %5 {offsets = [8, 0], sizes = [8, 32], strides = [1, 1]} : vector<16x32xf32> to vector<8x32xf32>
    %96 = vector.extract_strided_slice %6 {offsets = [8, 0], sizes = [8, 32], strides = [1, 1]} : vector<16x32xf32> to vector<8x32xf32>
    %97 = vector.extract_strided_slice %94 {offsets = [0, 0], sizes = [8, 8], strides = [1, 1]} : vector<8x32xf32> to vector<8x8xf32>
    %98 = vector.extract_strided_slice %95 {offsets = [0, 0], sizes = [8, 8], strides = [1, 1]} : vector<8x32xf32> to vector<8x8xf32>
    %99 = vector.extract_strided_slice %96 {offsets = [0, 0], sizes = [8, 8], strides = [1, 1]} : vector<8x32xf32> to vector<8x8xf32>
    %100 = tpu.transpose %98, [1, 0] : vector<8x8xf32> -> vector<8x8xf32>
    %cst_24 = arith.constant dense<0.000000e+00> : vector<8x8xf32>
    %101 = tpu.matmul %97, %100, %cst_24 {dimension_numbers = #tpu.dot_dimension_numbers<[1], [0], [0], [1], [0, 0, 1, 1], [], []>} : vector<8x8xf32>, vector<8x8xf32>, vector<8x8xf32> -> vector<8x8xf32>
    %102 = vector.broadcast %93 : i32 to vector<8x8xi32>
    %103 = arith.cmpi slt, %7, %102 : vector<8x8xi32>
    %cst_25 = arith.constant -1.000000e+06 : f32
    %104 = vector.broadcast %cst_25 : f32 to vector<8x8xf32>
    %105 = arith.select %103, %101, %104 : vector<8x8xi1>, vector<8x8xf32>
    %cst_26 = arith.constant dense<0xFF800000> : vector<8xf32>
    %106 = vector.multi_reduction <maximumf>, %105, %cst_26 [1] : vector<8x8xf32> to vector<8xf32>
    %107 = vector.shape_cast %106 : vector<8xf32> to vector<8x1xf32>
    %108 = vector.broadcast %107 : vector<8x1xf32> to vector<8x8xf32>
    %109 = arith.subf %105, %108 : vector<8x8xf32>
    %110 = math.exp %109 : vector<8x8xf32>
    %cst_27 = arith.constant dense<0.000000e+00> : vector<8xf32>
    %111 = vector.multi_reduction <add>, %110, %cst_27 [1] : vector<8x8xf32> to vector<8xf32>
    %112 = vector.shape_cast %111 : vector<8xf32> to vector<8x1xf32>
    %113 = tpu.reciprocal %112 {approx = true} : vector<8x1xf32> -> vector<8x1xf32>
    %114 = vector.broadcast %113 : vector<8x1xf32> to vector<8x8xf32>
    %115 = arith.mulf %110, %114 : vector<8x8xf32>
    %cst_28 = arith.constant dense<0.000000e+00> : vector<8x8xf32>
    %116 = tpu.matmul %115, %99, %cst_28 {dimension_numbers = #tpu.dot_dimension_numbers<[1], [0], [0], [1], [0, 0, 1, 1], [], []>} : vector<8x8xf32>, vector<8x8xf32>, vector<8x8xf32> -> vector<8x8xf32>
    %117 = vector.extract_strided_slice %94 {offsets = [0, 8], sizes = [8, 8], strides = [1, 1]} : vector<8x32xf32> to vector<8x8xf32>
    %118 = vector.extract_strided_slice %95 {offsets = [0, 8], sizes = [8, 8], strides = [1, 1]} : vector<8x32xf32> to vector<8x8xf32>
    %119 = vector.extract_strided_slice %96 {offsets = [0, 8], sizes = [8, 8], strides = [1, 1]} : vector<8x32xf32> to vector<8x8xf32>
    %120 = tpu.transpose %118, [1, 0] : vector<8x8xf32> -> vector<8x8xf32>
    %cst_29 = arith.constant dense<0.000000e+00> : vector<8x8xf32>
    %121 = tpu.matmul %117, %120, %cst_29 {dimension_numbers = #tpu.dot_dimension_numbers<[1], [0], [0], [1], [0, 0, 1, 1], [], []>} : vector<8x8xf32>, vector<8x8xf32>, vector<8x8xf32> -> vector<8x8xf32>
    %122 = vector.broadcast %93 : i32 to vector<8x8xi32>
    %123 = arith.cmpi slt, %7, %122 : vector<8x8xi32>
    %cst_30 = arith.constant -1.000000e+06 : f32
    %124 = vector.broadcast %cst_30 : f32 to vector<8x8xf32>
    %125 = arith.select %123, %121, %124 : vector<8x8xi1>, vector<8x8xf32>
    %cst_31 = arith.constant dense<0xFF800000> : vector<8xf32>
    %126 = vector.multi_reduction <maximumf>, %125, %cst_31 [1] : vector<8x8xf32> to vector<8xf32>
    %127 = vector.shape_cast %126 : vector<8xf32> to vector<8x1xf32>
    %128 = vector.broadcast %127 : vector<8x1xf32> to vector<8x8xf32>
    %129 = arith.subf %125, %128 : vector<8x8xf32>
    %130 = math.exp %129 : vector<8x8xf32>
    %cst_32 = arith.constant dense<0.000000e+00> : vector<8xf32>
    %131 = vector.multi_reduction <add>, %130, %cst_32 [1] : vector<8x8xf32> to vector<8xf32>
    %132 = vector.shape_cast %131 : vector<8xf32> to vector<8x1xf32>
    %133 = tpu.reciprocal %132 {approx = true} : vector<8x1xf32> -> vector<8x1xf32>
    %134 = vector.broadcast %133 : vector<8x1xf32> to vector<8x8xf32>
    %135 = arith.mulf %130, %134 : vector<8x8xf32>
    %cst_33 = arith.constant dense<0.000000e+00> : vector<8x8xf32>
    %136 = tpu.matmul %135, %119, %cst_33 {dimension_numbers = #tpu.dot_dimension_numbers<[1], [0], [0], [1], [0, 0, 1, 1], [], []>} : vector<8x8xf32>, vector<8x8xf32>, vector<8x8xf32> -> vector<8x8xf32>
    %137 = vector.extract_strided_slice %94 {offsets = [0, 16], sizes = [8, 8], strides = [1, 1]} : vector<8x32xf32> to vector<8x8xf32>
    %138 = vector.extract_strided_slice %95 {offsets = [0, 16], sizes = [8, 8], strides = [1, 1]} : vector<8x32xf32> to vector<8x8xf32>
    %139 = vector.extract_strided_slice %96 {offsets = [0, 16], sizes = [8, 8], strides = [1, 1]} : vector<8x32xf32> to vector<8x8xf32>
    %140 = tpu.transpose %138, [1, 0] : vector<8x8xf32> -> vector<8x8xf32>
    %cst_34 = arith.constant dense<0.000000e+00> : vector<8x8xf32>
    %141 = tpu.matmul %137, %140, %cst_34 {dimension_numbers = #tpu.dot_dimension_numbers<[1], [0], [0], [1], [0, 0, 1, 1], [], []>} : vector<8x8xf32>, vector<8x8xf32>, vector<8x8xf32> -> vector<8x8xf32>
    %142 = vector.broadcast %93 : i32 to vector<8x8xi32>
    %143 = arith.cmpi slt, %7, %142 : vector<8x8xi32>
    %cst_35 = arith.constant -1.000000e+06 : f32
    %144 = vector.broadcast %cst_35 : f32 to vector<8x8xf32>
    %145 = arith.select %143, %141, %144 : vector<8x8xi1>, vector<8x8xf32>
    %cst_36 = arith.constant dense<0xFF800000> : vector<8xf32>
    %146 = vector.multi_reduction <maximumf>, %145, %cst_36 [1] : vector<8x8xf32> to vector<8xf32>
    %147 = vector.shape_cast %146 : vector<8xf32> to vector<8x1xf32>
    %148 = vector.broadcast %147 : vector<8x1xf32> to vector<8x8xf32>
    %149 = arith.subf %145, %148 : vector<8x8xf32>
    %150 = math.exp %149 : vector<8x8xf32>
    %cst_37 = arith.constant dense<0.000000e+00> : vector<8xf32>
    %151 = vector.multi_reduction <add>, %150, %cst_37 [1] : vector<8x8xf32> to vector<8xf32>
    %152 = vector.shape_cast %151 : vector<8xf32> to vector<8x1xf32>
    %153 = tpu.reciprocal %152 {approx = true} : vector<8x1xf32> -> vector<8x1xf32>
    %154 = vector.broadcast %153 : vector<8x1xf32> to vector<8x8xf32>
    %155 = arith.mulf %150, %154 : vector<8x8xf32>
    %cst_38 = arith.constant dense<0.000000e+00> : vector<8x8xf32>
    %156 = tpu.matmul %155, %139, %cst_38 {dimension_numbers = #tpu.dot_dimension_numbers<[1], [0], [0], [1], [0, 0, 1, 1], [], []>} : vector<8x8xf32>, vector<8x8xf32>, vector<8x8xf32> -> vector<8x8xf32>
    %157 = vector.extract_strided_slice %94 {offsets = [0, 24], sizes = [8, 8], strides = [1, 1]} : vector<8x32xf32> to vector<8x8xf32>
    %158 = vector.extract_strided_slice %95 {offsets = [0, 24], sizes = [8, 8], strides = [1, 1]} : vector<8x32xf32> to vector<8x8xf32>
    %159 = vector.extract_strided_slice %96 {offsets = [0, 24], sizes = [8, 8], strides = [1, 1]} : vector<8x32xf32> to vector<8x8xf32>
    %160 = tpu.transpose %158, [1, 0] : vector<8x8xf32> -> vector<8x8xf32>
    %cst_39 = arith.constant dense<0.000000e+00> : vector<8x8xf32>
    %161 = tpu.matmul %157, %160, %cst_39 {dimension_numbers = #tpu.dot_dimension_numbers<[1], [0], [0], [1], [0, 0, 1, 1], [], []>} : vector<8x8xf32>, vector<8x8xf32>, vector<8x8xf32> -> vector<8x8xf32>
    %162 = vector.broadcast %93 : i32 to vector<8x8xi32>
    %163 = arith.cmpi slt, %7, %162 : vector<8x8xi32>
    %cst_40 = arith.constant -1.000000e+06 : f32
    %164 = vector.broadcast %cst_40 : f32 to vector<8x8xf32>
    %165 = arith.select %163, %161, %164 : vector<8x8xi1>, vector<8x8xf32>
    %cst_41 = arith.constant dense<0xFF800000> : vector<8xf32>
    %166 = vector.multi_reduction <maximumf>, %165, %cst_41 [1] : vector<8x8xf32> to vector<8xf32>
    %167 = vector.shape_cast %166 : vector<8xf32> to vector<8x1xf32>
    %168 = vector.broadcast %167 : vector<8x1xf32> to vector<8x8xf32>
    %169 = arith.subf %165, %168 : vector<8x8xf32>
    %170 = math.exp %169 : vector<8x8xf32>
    %cst_42 = arith.constant dense<0.000000e+00> : vector<8xf32>
    %171 = vector.multi_reduction <add>, %170, %cst_42 [1] : vector<8x8xf32> to vector<8xf32>
    %172 = vector.shape_cast %171 : vector<8xf32> to vector<8x1xf32>
    %173 = tpu.reciprocal %172 {approx = true} : vector<8x1xf32> -> vector<8x1xf32>
    %174 = vector.broadcast %173 : vector<8x1xf32> to vector<8x8xf32>
    %175 = arith.mulf %170, %174 : vector<8x8xf32>
    %cst_43 = arith.constant dense<0.000000e+00> : vector<8x8xf32>
    %176 = tpu.matmul %175, %159, %cst_43 {dimension_numbers = #tpu.dot_dimension_numbers<[1], [0], [0], [1], [0, 0, 1, 1], [], []>} : vector<8x8xf32>, vector<8x8xf32>, vector<8x8xf32> -> vector<8x8xf32>
    %177 = tpu.concatenate %116, %136, %156, %176 in 1 : vector<8x8xf32>, vector<8x8xf32>, vector<8x8xf32>, vector<8x8xf32> -> vector<8x32xf32>
    %178 = tpu.concatenate %92, %177 in 0 : vector<8x32xf32>, vector<8x32xf32> -> vector<16x32xf32>
    %179 = arith.truncf %178 : vector<16x32xf32> to vector<16x32xbf16>
    %c0_44 = arith.constant 0 : index
    %c0_45 = arith.constant 0 : index
    %180 = vector.load %arg4[%c0_44, %c0_45] : memref<32x32xbf16, #tpu.memory_space<vmem>>, vector<32x32xbf16>
    %cst_46 = arith.constant dense<0.000000e+00> : vector<16x32xf32>
    %181 = tpu.matmul %179, %180, %cst_46 {dimension_numbers = #tpu.dot_dimension_numbers<[1], [0], [0], [1], [0, 0, 1, 1], [], []>} : vector<16x32xbf16>, vector<32x32xbf16>, vector<16x32xf32> -> vector<16x32xf32>
    %c0_47 = arith.constant 0 : index
    %c0_48 = arith.constant 0 : index
    %182 = vector.load %arg9[%c0_47, %c0_48] : memref<1x32xf32, #tpu.memory_space<vmem>>, vector<1x32xf32>
    %c0_49 = arith.constant 0 : index
    %c0_50 = arith.constant 0 : index
    %183 = vector.load %arg10[%c0_49, %c0_50] : memref<1x32xf32, #tpu.memory_space<vmem>>, vector<1x32xf32>
    %c0_51 = arith.constant 0 : index
    %c0_52 = arith.constant 0 : index
    %184 = vector.load %arg11[%c0_51, %c0_52] : memref<1x32xf32, #tpu.memory_space<vmem>>, vector<1x32xf32>
    %c0_53 = arith.constant 0 : index
    %c0_54 = arith.constant 0 : index
    %185 = vector.load %arg12[%c0_53, %c0_54] : memref<1x32xf32, #tpu.memory_space<vmem>>, vector<1x32xf32>
    %c0_55 = arith.constant 0 : index
    %c0_56 = arith.constant 0 : index
    %186 = vector.load %arg6[%c0_55, %c0_56] : memref<1x64xf32, #tpu.memory_space<vmem>>, vector<1x64xf32>
    %c0_57 = arith.constant 0 : index
    %c0_58 = arith.constant 0 : index
    %187 = vector.load %arg8[%c0_57, %c0_58] : memref<1x32xf32, #tpu.memory_space<vmem>>, vector<1x32xf32>
    %188 = arith.addf %181, %0 : vector<16x32xf32>
    %cst_59 = arith.constant dense<0.000000e+00> : vector<16xf32>
    %189 = vector.multi_reduction <add>, %188, %cst_59 [1] : vector<16x32xf32> to vector<16xf32>
    %190 = vector.shape_cast %189 : vector<16xf32> to vector<16x1xf32>
    %cst_60 = arith.constant 3.200000e+01 : f32
    %191 = vector.broadcast %cst_60 : f32 to vector<16x1xf32>
    %192 = arith.divf %190, %191 : vector<16x1xf32>
    %193 = vector.broadcast %192 : vector<16x1xf32> to vector<16x32xf32>
    %194 = arith.subf %188, %193 : vector<16x32xf32>
    %195 = arith.mulf %194, %194 : vector<16x32xf32>
    %cst_61 = arith.constant dense<0.000000e+00> : vector<16xf32>
    %196 = vector.multi_reduction <add>, %195, %cst_61 [1] : vector<16x32xf32> to vector<16xf32>
    %197 = vector.shape_cast %196 : vector<16xf32> to vector<16x1xf32>
    %cst_62 = arith.constant 3.200000e+01 : f32
    %198 = vector.broadcast %cst_62 : f32 to vector<16x1xf32>
    %199 = arith.divf %197, %198 : vector<16x1xf32>
    %200 = vector.broadcast %192 : vector<16x1xf32> to vector<16x32xf32>
    %201 = arith.subf %188, %200 : vector<16x32xf32>
    %cst_63 = arith.constant 9.99999974E-6 : f32
    %202 = vector.broadcast %cst_63 : f32 to vector<16x1xf32>
    %203 = arith.addf %199, %202 : vector<16x1xf32>
    %204 = math.rsqrt %203 : vector<16x1xf32>
    %205 = vector.broadcast %204 : vector<16x1xf32> to vector<16x32xf32>
    %206 = arith.mulf %201, %205 : vector<16x32xf32>
    %207 = vector.broadcast %182 : vector<1x32xf32> to vector<16x32xf32>
    %208 = arith.mulf %206, %207 : vector<16x32xf32>
    %209 = vector.broadcast %183 : vector<1x32xf32> to vector<16x32xf32>
    %210 = arith.addf %208, %209 : vector<16x32xf32>
    %211 = arith.truncf %210 : vector<16x32xf32> to vector<16x32xbf16>
    %c0_64 = arith.constant 0 : index
    %c0_65 = arith.constant 0 : index
    %212 = vector.load %arg5[%c0_64, %c0_65] : memref<32x64xbf16, #tpu.memory_space<vmem>>, vector<32x64xbf16>
    %cst_66 = arith.constant dense<0.000000e+00> : vector<16x64xf32>
    %213 = tpu.matmul %211, %212, %cst_66 {dimension_numbers = #tpu.dot_dimension_numbers<[1], [0], [0], [1], [0, 0, 1, 1], [], []>} : vector<16x32xbf16>, vector<32x64xbf16>, vector<16x64xf32> -> vector<16x64xf32>
    %214 = vector.broadcast %186 : vector<1x64xf32> to vector<16x64xf32>
    %215 = arith.addf %213, %214 : vector<16x64xf32>
    %cst_67 = arith.constant 0.000000e+00 : f32
    %216 = vector.broadcast %cst_67 : f32 to vector<16x64xf32>
    %217 = arith.maximumf %215, %216 : vector<16x64xf32>
    %218 = arith.truncf %217 : vector<16x64xf32> to vector<16x64xbf16>
    %c0_68 = arith.constant 0 : index
    %c0_69 = arith.constant 0 : index
    %219 = vector.load %arg7[%c0_68, %c0_69] : memref<64x32xbf16, #tpu.memory_space<vmem>>, vector<64x32xbf16>
    %cst_70 = arith.constant dense<0.000000e+00> : vector<16x32xf32>
    %220 = tpu.matmul %218, %219, %cst_70 {dimension_numbers = #tpu.dot_dimension_numbers<[1], [0], [0], [1], [0, 0, 1, 1], [], []>} : vector<16x64xbf16>, vector<64x32xbf16>, vector<16x32xf32> -> vector<16x32xf32>
    %221 = vector.broadcast %187 : vector<1x32xf32> to vector<16x32xf32>
    %222 = arith.addf %220, %221 : vector<16x32xf32>
    %223 = arith.addf %222, %210 : vector<16x32xf32>
    %cst_71 = arith.constant dense<0.000000e+00> : vector<16xf32>
    %224 = vector.multi_reduction <add>, %223, %cst_71 [1] : vector<16x32xf32> to vector<16xf32>
    %225 = vector.shape_cast %224 : vector<16xf32> to vector<16x1xf32>
    %cst_72 = arith.constant 3.200000e+01 : f32
    %226 = vector.broadcast %cst_72 : f32 to vector<16x1xf32>
    %227 = arith.divf %225, %226 : vector<16x1xf32>
    %228 = vector.broadcast %227 : vector<16x1xf32> to vector<16x32xf32>
    %229 = arith.subf %223, %228 : vector<16x32xf32>
    %230 = arith.mulf %229, %229 : vector<16x32xf32>
    %cst_73 = arith.constant dense<0.000000e+00> : vector<16xf32>
    %231 = vector.multi_reduction <add>, %230, %cst_73 [1] : vector<16x32xf32> to vector<16xf32>
    %232 = vector.shape_cast %231 : vector<16xf32> to vector<16x1xf32>
    %cst_74 = arith.constant 3.200000e+01 : f32
    %233 = vector.broadcast %cst_74 : f32 to vector<16x1xf32>
    %234 = arith.divf %232, %233 : vector<16x1xf32>
    %235 = vector.broadcast %227 : vector<16x1xf32> to vector<16x32xf32>
    %236 = arith.subf %223, %235 : vector<16x32xf32>
    %cst_75 = arith.constant 9.99999974E-6 : f32
    %237 = vector.broadcast %cst_75 : f32 to vector<16x1xf32>
    %238 = arith.addf %234, %237 : vector<16x1xf32>
    %239 = math.rsqrt %238 : vector<16x1xf32>
    %240 = vector.broadcast %239 : vector<16x1xf32> to vector<16x32xf32>
    %241 = arith.mulf %236, %240 : vector<16x32xf32>
    %242 = vector.broadcast %184 : vector<1x32xf32> to vector<16x32xf32>
    %243 = arith.mulf %241, %242 : vector<16x32xf32>
    %244 = vector.broadcast %185 : vector<1x32xf32> to vector<16x32xf32>
    %245 = arith.addf %243, %244 : vector<16x32xf32>
    %c0_76 = arith.constant 0 : index
    %c0_77 = arith.constant 0 : index
    %246 = vector.load %arg13[%c0_76, %c0_77] : memref<16x32xf32, #tpu.memory_space<vmem>>, vector<16x32xf32>
    tpu.vector_store %arg13[%c0_76, %c0_77], %245 {strides = array<i32>} : memref<16x32xf32, #tpu.memory_space<vmem>>, vector<16x32xf32>,
    return
  }
  func.func @transform_0(%arg0: i32, %arg1: memref<2xi32, #tpu.memory_space<smem>>) -> (i32, i32) {
    %c0_i32 = arith.constant 0 : i32
    %c0_i32_0 = arith.constant 0 : i32
    %c0_i32_1 = arith.constant 0 : i32
    return %c0_i32, %c0_i32_0 : i32, i32
  }
  func.func @transform_1(%arg0: i32, %arg1: memref<2xi32, #tpu.memory_space<smem>>) -> (i32, i32) {
    %c0_i32 = arith.constant 0 : i32
    %c0_i32_0 = arith.constant 0 : i32
    %c0_i32_1 = arith.constant 0 : i32
    return %c0_i32, %c0_i32_0 : i32, i32
  }
  func.func @transform_2(%arg0: i32, %arg1: memref<2xi32, #tpu.memory_space<smem>>) -> (i32, i32) {
    %c0_i32 = arith.constant 0 : i32
    %c0_i32_0 = arith.constant 0 : i32
    %c0_i32_1 = arith.constant 0 : i32
    return %c0_i32, %c0_i32_0 : i32, i32
  }
  func.func @transform_3(%arg0: i32, %arg1: memref<2xi32, #tpu.memory_space<smem>>) -> (i32, i32) {
    %c0_i32 = arith.constant 0 : i32
    %c0_i32_0 = arith.constant 0 : i32
    %c0_i32_1 = arith.constant 0 : i32
    return %c0_i32, %c0_i32_0 : i32, i32
  }
  func.func @transform_4(%arg0: i32, %arg1: memref<2xi32, #tpu.memory_space<smem>>) -> (i32, i32) {
    %c0_i32 = arith.constant 0 : i32
    %c0_i32_0 = arith.constant 0 : i32
    %c0_i32_1 = arith.constant 0 : i32
    return %c0_i32, %c0_i32_0 : i32, i32
  }
  func.func @transform_5(%arg0: i32, %arg1: memref<2xi32, #tpu.memory_space<smem>>) -> (i32, i32) {
    %c0_i32 = arith.constant 0 : i32
    %c0_i32_0 = arith.constant 0 : i32
    %c0_i32_1 = arith.constant 0 : i32
    return %c0_i32, %c0_i32_0 : i32, i32
  }
  func.func @transform_6(%arg0: i32, %arg1: memref<2xi32, #tpu.memory_space<smem>>) -> (i32, i32) {
    %c0_i32 = arith.constant 0 : i32
    %c0_i32_0 = arith.constant 0 : i32
    %c0_i32_1 = arith.constant 0 : i32
    return %c0_i32, %c0_i32_0 : i32, i32
  }
  func.func @transform_7(%arg0: i32, %arg1: memref<2xi32, #tpu.memory_space<smem>>) -> (i32, i32) {
    %c0_i32 = arith.constant 0 : i32
    %c0_i32_0 = arith.constant 0 : i32
    %c0_i32_1 = arith.constant 0 : i32
    return %c0_i32, %c0_i32_0 : i32, i32
  }
  func.func @transform_8(%arg0: i32, %arg1: memref<2xi32, #tpu.memory_space<smem>>) -> (i32, i32) {
    %c0_i32 = arith.constant 0 : i32
    %c0_i32_0 = arith.constant 0 : i32
    %c0_i32_1 = arith.constant 0 : i32
    return %c0_i32, %c0_i32_0 : i32, i32
  }
  func.func @transform_9(%arg0: i32, %arg1: memref<2xi32, #tpu.memory_space<smem>>) -> (i32, i32) {
    %c0_i32 = arith.constant 0 : i32
    %c0_i32_0 = arith.constant 0 : i32
    %c0_i32_1 = arith.constant 0 : i32
    return %c0_i32, %c0_i32_0 : i32, i32
  }
  func.func @transform_10(%arg0: i32, %arg1: memref<2xi32, #tpu.memory_space<smem>>) -> (i32, i32) {
    %c0_i32 = arith.constant 0 : i32
    %c0_i32_0 = arith.constant 0 : i32
    %c0_i32_1 = arith.constant 0 : i32
    return %c0_i32, %c0_i32_0 : i32, i32
  }
  func.func @transform_11(%arg0: i32, %arg1: memref<2xi32, #tpu.memory_space<smem>>) -> (i32, i32) {
    %c0_i32 = arith.constant 0 : i32
    %c0_i32_0 = arith.constant 0 : i32
    %c0_i32_1 = arith.constant 0 : i32
    return %c0_i32, %c0_i32_0 : i32, i32
  }
}

</mosaic_0001>

<llo_original>
// kernel: tpu_custom_call.1
$region0: #{tpu_custom_call.1}
  #allocation0 [shape = 'u32[]', space=smem, size = 0x4, offset = 0x4, fixed_abs, tag = 'smem constant byte address 0x4 - core index']
  #allocation1 [shape = 'u32[144,128]{1,0:T(1,128)}', space=vmem, size = 0x12000, scoped, tag = 'internal scratch']
  #allocation2 [shape = 's32[1]{0}', space=sflag, size = 0x4, scoped, tag = 'scoped memory for tpu_custom_call.1']
  #allocation3 [shape = 'u8[512]{0}', space=smem, size = 0x200, scoped, tag = 'prefetched SMEM operand 0']
  %s0 = inlined_call_operand.hbm [shape: s32[2], index: 0, kind: input, shape index: {}]
  %s1 = inlined_call_operand.vmem [shape: f32[16,32], index: 1, kind: input, shape index: {}]
  %s2 = inlined_call_operand.vmem [shape: bf16[32,96], index: 2, kind: input, shape index: {}]
  %s3 = inlined_call_operand.vmem [shape: bf16[32,32], index: 3, kind: input, shape index: {}]
  %s4 = inlined_call_operand.hbm [shape: bf16[32,64], index: 4, kind: input, shape index: {}]
  %s5 = inlined_call_operand.vmem [shape: f32[1,64], index: 5, kind: input, shape index: {}]
  %s6 = inlined_call_operand.vmem [shape: bf16[64,32], index: 6, kind: input, shape index: {}]
  %s7 = inlined_call_operand.vmem [shape: f32[1,32], index: 7, kind: input, shape index: {}]
  %s8 = inlined_call_operand.vmem [shape: f32[1,32], index: 8, kind: input, shape index: {}]
  %s9 = inlined_call_operand.vmem [shape: f32[1,32], index: 9, kind: input, shape index: {}]
  %s10 = inlined_call_operand.vmem [shape: f32[1,32], index: 10, kind: input, shape index: {}]
  %s11 = inlined_call_operand.vmem [shape: f32[1,32], index: 11, kind: input, shape index: {}]
  %s12 = inlined_call_operand.hbm [shape: f32[16,32], index: 12, kind: output, shape index: {}]
  %s13 = sld [smem:[#allocation0]]
  $region58: #{tpu_custom_call.1} parent=0
    _
  %s15 = ssub.s32 1, %s13
  %s16 = scalar_select 0, %s15, %s13
  %18 = dma.hbm_to_smem %s0, 16, [#allocation3], [#allocation2]
  %19 = dma.done [#allocation2], 16
  %20 = sfence
  $region1: #{tpu_custom_call.1} parent=0
    #allocation4 [shape = 'u8[8192]{0}', space=vmem, size = 0x2000, scoped, tag = 'input window, operand 4, single buffered']
    #allocation5 [shape = 's32[1]{0}', space=sflag, size = 0x4, scoped, tag = 'scoped memory for tpu_custom_call.1']
    #allocation6 [shape = 's32[1]{0}', space=sflag, size = 0x4, scoped, tag = 'scoped memory for tpu_custom_call.1']
    #allocation7 [shape = 'u8[8192]{0}', space=vmem, size = 0x2000, scoped, tag = 'output window, operand 0, single buffered']
    %21 = vsyncpa [#allocation5], 0
    %22 = vsyncpa [#allocation6], 0
    // Predicated region
    $region2: #{tpu_custom_call.1} parent=1 // pred_check
      _
    $region3: #{tpu_custom_call.1} parent=1 // pred_check_branch
      %24 = sbr.rel (0) target = $region5
    $region4: #{tpu_custom_call.1} parent=1 // pred_region
      _
    $region5: #{tpu_custom_call.1} parent=1 // pred_fallthru
      _
    // Predicated region
    $region6: #{tpu_custom_call.1} parent=1 // pred_check
      _
    $region7: #{tpu_custom_call.1} parent=1 // pred_check_branch
      %26 = sbr.rel (0) target = $region9
    $region8: #{tpu_custom_call.1} parent=1 // pred_region
      _
    $region9: #{tpu_custom_call.1} parent=1 // pred_fallthru
      _
    // Predicated region
    $region10: #{tpu_custom_call.1} parent=1 // pred_check
      _
    $region11: #{tpu_custom_call.1} parent=1 // pred_check_branch
      %28 = sbr.rel (0) target = $region13
    $region12: #{tpu_custom_call.1} parent=1 // pred_region
      _
    $region13: #{tpu_custom_call.1} parent=1 // pred_fallthru
      _
    // Predicated region
    $region14: #{tpu_custom_call.1} parent=1 // pred_check
      _
    $region15: #{tpu_custom_call.1} parent=1 // pred_check_branch
      %30 = sbr.rel (0) target = $region17
    $region16: #{tpu_custom_call.1} parent=1 // pred_region
      %s32 = ssub.s32 256, 256
      %33 = vsyncadd [#allocation5], %s32
      %s34 = sshll.u32 [#allocation4], 4
      %s35 = int_to_ptr.vmem [resolvable:$true] %s34
      %40 = dma.hbm_to_vmem [thread:$0]  %s4, 256, %s35, [#allocation5], 64, 64, 4
    $region17: #{tpu_custom_call.1} parent=1 // pred_fallthru
      _
    // Predicated region
    $region18: #{tpu_custom_call.1} parent=1 // pred_check
      _
    $region19: #{tpu_custom_call.1} parent=1 // pred_check_branch
      %42 = sbr.rel (0) target = $region21
    $region20: #{tpu_custom_call.1} parent=1 // pred_region
      _
    $region21: #{tpu_custom_call.1} parent=1 // pred_fallthru
      _
    // Predicated region
    $region22: #{tpu_custom_call.1} parent=1 // pred_check
      _
    $region23: #{tpu_custom_call.1} parent=1 // pred_check_branch
      %44 = sbr.rel (0) target = $region25
    $region24: #{tpu_custom_call.1} parent=1 // pred_region
      _
    $region25: #{tpu_custom_call.1} parent=1 // pred_fallthru
      _
    // Predicated region
    $region26: #{tpu_custom_call.1} parent=1 // pred_check
      _
    $region27: #{tpu_custom_call.1} parent=1 // pred_check_branch
      %46 = sbr.rel (0) target = $region29
    $region28: #{tpu_custom_call.1} parent=1 // pred_region
      _
    $region29: #{tpu_custom_call.1} parent=1 // pred_fallthru
      _
    // Predicated region
    $region30: #{tpu_custom_call.1} parent=1 // pred_check
      _
    $region31: #{tpu_custom_call.1} parent=1 // pred_check_branch
      %48 = sbr.rel (0) target = $region33
    $region32: #{tpu_custom_call.1} parent=1 // pred_region
      _
    $region33: #{tpu_custom_call.1} parent=1 // pred_fallthru
      _
    // Predicated region
    $region34: #{tpu_custom_call.1} parent=1 // pred_check
      _
    $region35: #{tpu_custom_call.1} parent=1 // pred_check_branch
      %50 = sbr.rel (0) target = $region37
    $region36: #{tpu_custom_call.1} parent=1 // pred_region
      _
    $region37: #{tpu_custom_call.1} parent=1 // pred_fallthru
      _
    // Predicated region
    $region38: #{tpu_custom_call.1} parent=1 // pred_check
      _
    $region39: #{tpu_custom_call.1} parent=1 // pred_check_branch
      %52 = sbr.rel (0) target = $region41
    $region40: #{tpu_custom_call.1} parent=1 // pred_region
      _
    $region41: #{tpu_custom_call.1} parent=1 // pred_fallthru
      _
    // Predicated region
    $region42: #{tpu_custom_call.1} parent=1 // pred_check
      _
    $region43: #{tpu_custom_call.1} parent=1 // pred_check_branch
      %54 = sbr.rel (0) target = $region45
    $region44: #{tpu_custom_call.1} parent=1 // pred_region
      _
    $region45: #{tpu_custom_call.1} parent=1 // pred_fallthru
      _
    // Predicated region
    $region46: #{tpu_custom_call.1} parent=1 // pred_check
      _
    $region47: #{tpu_custom_call.1} parent=1 // pred_check_branch
      %56 = sbr.rel (0) target = $region49
    $region48: #{tpu_custom_call.1} parent=1 // pred_region
      %57 = dma.done [#allocation5], 256
    $region49: #{tpu_custom_call.1} parent=1 // pred_fallthru
      _
    %v59 = vld [vmem:[%s1] sm:$0xff]
    %v60 = vld [vmem:[%s1 + $0x8] sm:$0xff]
    %v61 = vpack.c.bf16 %v60, %v59
    %v62 = vld [vmem:[%s2] sm:$0xf]
    %v63 = vld [vmem:[%s2 + $0x4] sm:$0xf]
    %v64 = vld [vmem:[%s2 + $0x8] sm:$0xf]
    %v65 = vld [vmem:[%s2 + $0xc] sm:$0xf]
    %v70 = vunpack.c.l.b16 %v62
    %v71 = vunpack.c.l.b16 %v63
    %v72 = vunpack.c.l.b16 %v64
    %v73 = vunpack.c.l.b16 %v65
    %v74 = vpack.c.b16 %v71, %v70
    %v75 = vpack.c.b16 %v73, %v72
    %vm78 = vcmask 261120
    %v80 = vsel %vm78, %v61, 0
    %82 = vmatprep.subr.bf16.mxu0 0
    %83 = vmatpush1.bf16.msra.mxu0 %v74
    %84 = vmatprep.subr.bf16.mxu0 0
    %85 = vmatpush1.bf16.msra.mxu0 %v75
    %86 = vmatprep.subr.bf16.mxu0 0
    %87 = vmatpush1.bf16.msra.mxu0 0
    %88 = vmatprep.subr.bf16.mxu0 0
    %89 = vmatpush1.bf16.msra.mxu0 0
    %90 = vmatprep.subr.bf16.mxu0 0
    %91 = vmatpush1.bf16.msra.mxu0 0
    %92 = vmatprep.subr.bf16.mxu0 0
    %93 = vmatpush1.bf16.msra.mxu0 0
    %94 = vmatprep.subr.bf16.mxu0 0
    %95 = vmatpush1.bf16.msra.mxu0 0
    %96 = vmatprep.subr.bf16.mxu0 0
    %97 = vmatpush1.bf16.msra.mxu0 0
    %98 = vmatprep.subr.bf16.mxu0 0
    %99 = vmatpush1.bf16.msra.mxu0 0
    %100 = vmatprep.subr.bf16.mxu0 0
    %101 = vmatpush1.bf16.msra.mxu0 0
    %102 = vmatprep.subr.bf16.mxu0 0
    %103 = vmatpush1.bf16.msra.mxu0 0
    %104 = vmatprep.subr.bf16.mxu0 0
    %105 = vmatpush1.bf16.msra.mxu0 0
    %106 = vmatprep.subr.bf16.mxu0 0
    %107 = vmatpush1.bf16.msra.mxu0 0
    %108 = vmatprep.subr.bf16.mxu0 0
    %109 = vmatpush1.bf16.msra.mxu0 0
    %110 = vmatprep.subr.bf16.mxu0 0
    %111 = vmatpush1.bf16.msra.mxu0 0
    %112 = vmatprep.subr.bf16.mxu0 0
    %113 = vmatpush1.bf16.msra.mxu0 0
    %114 = vmatprep.mubr.bf16.mxu0 0
    %115 = vmatmul.mubr.bf16.gmra.mrb[0].mxu0 %v80
    %v116 = vpop.f32.mrb[0].mxu0
    %v117 = vadd.f32 0.0, %v116
    %v118 = vpop.f32.mrb[0].mxu0
    %v119 = vpop.f32.mrb[0].mxu0
    %v120 = vadd.f32 0.0, %v119
    %v121 = vpop.f32.mrb[0].mxu0
    %122 = vdwg.mxu0
    %v123 = vlaneseq
    %v124 = vand.u32 %v123, 127
    %s125 = sld [smem:[#allocation3]]
    %127 = vrot.lane.b32.xlu0 %v117, 96
    %v128 = vpop.permute.xlu0 %127
    %vm129 = vcmask 64512
    %v130 = vsel %vm129, %v117, 0
    %v132 = vsel %vm129, %v128, 0
    %134 = vmatprep.subr.mxu0 0.0
    %135 = vmatpush1.xpose.msra.mxu0 %v132
    %136 = vmatprep.subr.mxu0 0.0
    %137 = vmatpush1.xpose.msra.mxu0 0.0
    %138 = vmatprep.subr.mxu0 0.0
    %139 = vmatpush1.xpose.msra.mxu0 0.0
    %140 = vmatprep.subr.mxu0 0.0
    %141 = vmatpush1.xpose.msra.mxu0 0.0
    %142 = vmatprep.subr.mxu0 0.0
    %143 = vmatpush1.xpose.msra.mxu0 0.0
    %144 = vmatprep.subr.mxu0 0.0
    %145 = vmatpush1.xpose.msra.mxu0 0.0
    %146 = vmatprep.subr.mxu0 0.0
    %147 = vmatpush1.xpose.msra.mxu0 0.0
    %148 = vmatprep.subr.mxu0 0.0
    %149 = vmatpush1.xpose.msra.mxu0 0.0
    %150 = vmatprep.subr.mxu0 0.0
    %151 = vmatpush1.xpose.msra.mxu0 0.0
    %152 = vmatprep.subr.mxu0 0.0
    %153 = vmatpush1.xpose.msra.mxu0 0.0
    %154 = vmatprep.subr.mxu0 0.0
    %155 = vmatpush1.xpose.msra.mxu0 0.0
    %156 = vmatprep.subr.mxu0 0.0
    %157 = vmatpush1.xpose.msra.mxu0 0.0
    %158 = vmatprep.subr.mxu0 0.0
    %159 = vmatpush1.xpose.msra.mxu0 0.0
    %160 = vmatprep.subr.mxu0 0.0
    %161 = vmatpush1.xpose.msra.mxu0 0.0
    %162 = vmatprep.subr.mxu0 0.0
    %163 = vmatpush1.xpose.msra.mxu0 0.0
    %164 = vmatprep.subr.mxu0 0.0
    %165 = vmatpush1.xpose.msra.mxu0 0.0
    %166 = vmatprep.subr.mxu0 0.0
    %167 = vmatpush1.xpose.msra.mxu0 0.0
    %168 = vmatprep.subr.mxu0 0.0
    %169 = vmatpush1.xpose.msra.mxu0 0.0
    %170 = vmatprep.subr.mxu0 0.0
    %171 = vmatpush1.xpose.msra.mxu0 0.0
    %172 = vmatprep.subr.mxu0 0.0
    %173 = vmatpush1.xpose.msra.mxu0 0.0
    %174 = vmatprep.subr.mxu0 0.0
    %175 = vmatpush1.xpose.msra.mxu0 0.0
    %176 = vmatprep.subr.mxu0 0.0
    %177 = vmatpush1.xpose.msra.mxu0 0.0
    %178 = vmatprep.subr.mxu0 0.0
    %179 = vmatpush1.xpose.msra.mxu0 0.0
    %180 = vmatprep.subr.mxu0 0.0
    %181 = vmatpush1.xpose.msra.mxu0 0.0
    %182 = vmatprep.subr.mxu0 0.0
    %183 = vmatpush1.xpose.msra.mxu0 0.0
    %184 = vmatprep.subr.mxu0 0.0
    %185 = vmatpush1.xpose.msra.mxu0 0.0
    %186 = vmatprep.subr.mxu0 0.0
    %187 = vmatpush1.xpose.msra.mxu0 0.0
    %188 = vmatprep.subr.mxu0 0.0
    %189 = vmatpush1.xpose.msra.mxu0 0.0
    %190 = vmatprep.subr.mxu0 0.0
    %191 = vmatpush1.xpose.msra.mxu0 0.0
    %192 = vmatprep.subr.mxu0 0.0
    %193 = vmatpush1.xpose.msra.mxu0 0.0
    %194 = vmatprep.subr.mxu0 0.0
    %195 = vmatpush1.xpose.msra.mxu0 0.0
    %196 = vmatprep.subr.mxu0 0.0
    %197 = vmatpush1.xpose.msra.mxu0 0.0
    %198 = vmatprep.mubr.f32.mxu0 0.0
    %199 = vmatmul.mubr.f32.gmra.mrb[0].mxu0 %v130
    %v200 = vpop.f32.mrb[0].mxu0
    %v201 = vadd.f32 0.0, %v200
    %v202 = vpop.f32.mrb[0].mxu0
    %203 = vdwg.mxu0
    %v204 = vstv %s125
    %vm205 = vcmp.lt.s32.totalorder %v124, %v204
    %v206 = vsel %vm205, %v201, -1000000.0
    %v207 = vsel %vm129, %v206, -inf
    %208 = vmax.xlane.f32.xlu0 %v207
    %v209 = vpop.xlane.xlu0 %208
    %v210 = vsub.f32 %v206, %v209
    %v211 = vmul.f32 %v210, 1.442695
    %v212 = vpow.pop %v211
    %v213 = vsel %vm129, %v212, 0.0
    %214 = vadd.xlane.f32.xlu0 %v213
    %v215 = vpop.xlane.xlu0 %214
    %v216 = vrcp.pop %v215
    %v217 = vmul.f32 %v212, %v216
    %218 = vrot.lane.b32.xlu0 %v117, 64
    %v219 = vpop.permute.xlu0 %218
    %v222 = vsel %vm129, %v217, 0
    %224 = vmatprep.subr.mxu0 0.0
    %225 = vmatpush1.msra.mxu0 %v219
    %226 = vmatprep.subr.mxu0 0.0
    %227 = vmatpush1.msra.mxu0 0.0
    %228 = vmatprep.subr.mxu0 0.0
    %229 = vmatpush1.msra.mxu0 0.0
    %230 = vmatprep.subr.mxu0 0.0
    %231 = vmatpush1.msra.mxu0 0.0
    %232 = vmatprep.subr.mxu0 0.0
    %233 = vmatpush1.msra.mxu0 0.0
    %234 = vmatprep.subr.mxu0 0.0
    %235 = vmatpush1.msra.mxu0 0.0
    %236 = vmatprep.subr.mxu0 0.0
    %237 = vmatpush1.msra.mxu0 0.0
    %238 = vmatprep.subr.mxu0 0.0
    %239 = vmatpush1.msra.mxu0 0.0
    %240 = vmatprep.subr.mxu0 0.0
    %241 = vmatpush1.msra.mxu0 0.0
    %242 = vmatprep.subr.mxu0 0.0
    %243 = vmatpush1.msra.mxu0 0.0
    %244 = vmatprep.subr.mxu0 0.0
    %245 = vmatpush1.msra.mxu0 0.0
    %246 = vmatprep.subr.mxu0 0.0
    %247 = vmatpush1.msra.mxu0 0.0
    %248 = vmatprep.subr.mxu0 0.0
    %249 = vmatpush1.msra.mxu0 0.0
    %250 = vmatprep.subr.mxu0 0.0
    %251 = vmatpush1.msra.mxu0 0.0
    %252 = vmatprep.subr.mxu0 0.0
    %253 = vmatpush1.msra.mxu0 0.0
    %254 = vmatprep.subr.mxu0 0.0
    %255 = vmatpush1.msra.mxu0 0.0
    %256 = vmatprep.subr.mxu0 0.0
    %257 = vmatpush1.msra.mxu0 0.0
    %258 = vmatprep.subr.mxu0 0.0
    %259 = vmatpush1.msra.mxu0 0.0
    %260 = vmatprep.subr.mxu0 0.0
    %261 = vmatpush1.msra.mxu0 0.0
    %262 = vmatprep.subr.mxu0 0.0
    %263 = vmatpush1.msra.mxu0 0.0
    %264 = vmatprep.subr.mxu0 0.0
    %265 = vmatpush1.msra.mxu0 0.0
    %266 = vmatprep.subr.mxu0 0.0
    %267 = vmatpush1.msra.mxu0 0.0
    %268 = vmatprep.subr.mxu0 0.0
    %269 = vmatpush1.msra.mxu0 0.0
    %270 = vmatprep.subr.mxu0 0.0
    %271 = vmatpush1.msra.mxu0 0.0
    %272 = vmatprep.subr.mxu0 0.0
    %273 = vmatpush1.msra.mxu0 0.0
    %274 = vmatprep.subr.mxu0 0.0
    %275 = vmatpush1.msra.mxu0 0.0
    %276 = vmatprep.subr.mxu0 0.0
    %277 = vmatpush1.msra.mxu0 0.0
    %278 = vmatprep.subr.mxu0 0.0
    %279 = vmatpush1.msra.mxu0 0.0
    %280 = vmatprep.subr.mxu0 0.0
    %281 = vmatpush1.msra.mxu0 0.0
    %282 = vmatprep.subr.mxu0 0.0
    %283 = vmatpush1.msra.mxu0 0.0
    %284 = vmatprep.subr.mxu0 0.0
    %285 = vmatpush1.msra.mxu0 0.0
    %286 = vmatprep.subr.mxu0 0.0
    %287 = vmatpush1.msra.mxu0 0.0
    %288 = vmatprep.mubr.f32.mxu0 0.0
    %289 = vmatmul.mubr.f32.gmra.mrb[0].mxu0 %v222
    %v290 = vpop.f32.mrb[0].mxu0
    %v291 = vadd.f32 0.0, %v290
    %v292 = vpop.f32.mrb[0].mxu0
    %293 = vdwg.mxu0
    %294 = vrot.lane.b32.xlu0 %v117, 120
    %v295 = vpop.permute.xlu0 %294
    %296 = vrot.lane.b32.xlu0 %v117, 88
    %v297 = vpop.permute.xlu0 %296
    %v298 = vsel %vm129, %v295, 0
    %v300 = vsel %vm129, %v297, 0
    %302 = vmatprep.subr.mxu0 0.0
    %303 = vmatpush1.xpose.msra.mxu0 %v300
    %304 = vmatprep.subr.mxu0 0.0
    %305 = vmatpush1.xpose.msra.mxu0 0.0
    %306 = vmatprep.subr.mxu0 0.0
    %307 = vmatpush1.xpose.msra.mxu0 0.0
    %308 = vmatprep.subr.mxu0 0.0
    %309 = vmatpush1.xpose.msra.mxu0 0.0
    %310 = vmatprep.subr.mxu0 0.0
    %311 = vmatpush1.xpose.msra.mxu0 0.0
    %312 = vmatprep.subr.mxu0 0.0
    %313 = vmatpush1.xpose.msra.mxu0 0.0
    %314 = vmatprep.subr.mxu0 0.0
    %315 = vmatpush1.xpose.msra.mxu0 0.0
    %316 = vmatprep.subr.mxu0 0.0
    %317 = vmatpush1.xpose.msra.mxu0 0.0
    %318 = vmatprep.subr.mxu0 0.0
    %319 = vmatpush1.xpose.msra.mxu0 0.0
    %320 = vmatprep.subr.mxu0 0.0
    %321 = vmatpush1.xpose.msra.mxu0 0.0
    %322 = vmatprep.subr.mxu0 0.0
    %323 = vmatpush1.xpose.msra.mxu0 0.0
    %324 = vmatprep.subr.mxu0 0.0
    %325 = vmatpush1.xpose.msra.mxu0 0.0
    %326 = vmatprep.subr.mxu0 0.0
    %327 = vmatpush1.xpose.msra.mxu0 0.0
    %328 = vmatprep.subr.mxu0 0.0
    %329 = vmatpush1.xpose.msra.mxu0 0.0
    %330 = vmatprep.subr.mxu0 0.0
    %331 = vmatpush1.xpose.msra.mxu0 0.0
    %332 = vmatprep.subr.mxu0 0.0
    %333 = vmatpush1.xpose.msra.mxu0 0.0
    %334 = vmatprep.subr.mxu0 0.0
    %335 = vmatpush1.xpose.msra.mxu0 0.0
    %336 = vmatprep.subr.mxu0 0.0
    %337 = vmatpush1.xpose.msra.mxu0 0.0
    %338 = vmatprep.subr.mxu0 0.0
    %339 = vmatpush1.xpose.msra.mxu0 0.0
    %340 = vmatprep.subr.mxu0 0.0
    %341 = vmatpush1.xpose.msra.mxu0 0.0
    %342 = vmatprep.subr.mxu0 0.0
    %343 = vmatpush1.xpose.msra.mxu0 0.0
    %344 = vmatprep.subr.mxu0 0.0
    %345 = vmatpush1.xpose.msra.mxu0 0.0
    %346 = vmatprep.subr.mxu0 0.0
    %347 = vmatpush1.xpose.msra.mxu0 0.0
    %348 = vmatprep.subr.mxu0 0.0
    %349 = vmatpush1.xpose.msra.mxu0 0.0
    %350 = vmatprep.subr.mxu0 0.0
    %351 = vmatpush1.xpose.msra.mxu0 0.0
    %352 = vmatprep.subr.mxu0 0.0
    %353 = vmatpush1.xpose.msra.mxu0 0.0
    %354 = vmatprep.subr.mxu0 0.0
    %355 = vmatpush1.xpose.msra.mxu0 0.0
    %356 = vmatprep.subr.mxu0 0.0
    %357 = vmatpush1.xpose.msra.mxu0 0.0
    %358 = vmatprep.subr.mxu0 0.0
    %359 = vmatpush1.xpose.msra.mxu0 0.0
    %360 = vmatprep.subr.mxu0 0.0
    %361 = vmatpush1.xpose.msra.mxu0 0.0
    %362 = vmatprep.subr.mxu0 0.0
    %363 = vmatpush1.xpose.msra.mxu0 0.0
    %364 = vmatprep.subr.mxu0 0.0
    %365 = vmatpush1.xpose.msra.mxu0 0.0
    %366 = vmatprep.mubr.f32.mxu0 0.0
    %367 = vmatmul.mubr.f32.gmra.mrb[0].mxu0 %v298
    %v368 = vpop.f32.mrb[0].mxu0
    %v369 = vadd.f32 0.0, %v368
    %v370 = vpop.f32.mrb[0].mxu0
    %371 = vdwg.mxu0
    %v372 = vsel %vm205, %v369, -1000000.0
    %v373 = vsel %vm129, %v372, -inf
    %374 = vmax.xlane.f32.xlu0 %v373
    %v375 = vpop.xlane.xlu0 %374
    %v376 = vsub.f32 %v372, %v375
    %v377 = vmul.f32 %v376, 1.442695
    %v378 = vpow.pop %v377
    %v379 = vsel %vm129, %v378, 0.0
    %380 = vadd.xlane.f32.xlu0 %v379
    %v381 = vpop.xlane.xlu0 %380
    %v382 = vrcp.pop %v381
    %v383 = vmul.f32 %v378, %v382
    %384 = vrot.lane.b32.xlu0 %v117, 56
    %v385 = vpop.permute.xlu0 %384
    %v388 = vsel %vm129, %v383, 0
    %390 = vmatprep.subr.mxu0 0.0
    %391 = vmatpush1.msra.mxu0 %v385
    %392 = vmatprep.subr.mxu0 0.0
    %393 = vmatpush1.msra.mxu0 0.0
    %394 = vmatprep.subr.mxu0 0.0
    %395 = vmatpush1.msra.mxu0 0.0
    %396 = vmatprep.subr.mxu0 0.0
    %397 = vmatpush1.msra.mxu0 0.0
    %398 = vmatprep.subr.mxu0 0.0
    %399 = vmatpush1.msra.mxu0 0.0
    %400 = vmatprep.subr.mxu0 0.0
    %401 = vmatpush1.msra.mxu0 0.0
    %402 = vmatprep.subr.mxu0 0.0
    %403 = vmatpush1.msra.mxu0 0.0
    %404 = vmatprep.subr.mxu0 0.0
    %405 = vmatpush1.msra.mxu0 0.0
    %406 = vmatprep.subr.mxu0 0.0
    %407 = vmatpush1.msra.mxu0 0.0
    %408 = vmatprep.subr.mxu0 0.0
    %409 = vmatpush1.msra.mxu0 0.0
    %410 = vmatprep.subr.mxu0 0.0
    %411 = vmatpush1.msra.mxu0 0.0
    %412 = vmatprep.subr.mxu0 0.0
    %413 = vmatpush1.msra.mxu0 0.0
    %414 = vmatprep.subr.mxu0 0.0
    %415 = vmatpush1.msra.mxu0 0.0
    %416 = vmatprep.subr.mxu0 0.0
    %417 = vmatpush1.msra.mxu0 0.0
    %418 = vmatprep.subr.mxu0 0.0
    %419 = vmatpush1.msra.mxu0 0.0
    %420 = vmatprep.subr.mxu0 0.0
    %421 = vmatpush1.msra.mxu0 0.0
    %422 = vmatprep.subr.mxu0 0.0
    %423 = vmatpush1.msra.mxu0 0.0
    %424 = vmatprep.subr.mxu0 0.0
    %425 = vmatpush1.msra.mxu0 0.0
    %426 = vmatprep.subr.mxu0 0.0
    %427 = vmatpush1.msra.mxu0 0.0
    %428 = vmatprep.subr.mxu0 0.0
    %429 = vmatpush1.msra.mxu0 0.0
    %430 = vmatprep.subr.mxu0 0.0
    %431 = vmatpush1.msra.mxu0 0.0
    %432 = vmatprep.subr.mxu0 0.0
    %433 = vmatpush1.msra.mxu0 0.0
    %434 = vmatprep.subr.mxu0 0.0
    %435 = vmatpush1.msra.mxu0 0.0
    %436 = vmatprep.subr.mxu0 0.0
    %437 = vmatpush1.msra.mxu0 0.0
    %438 = vmatprep.subr.mxu0 0.0
    %439 = vmatpush1.msra.mxu0 0.0
    %440 = vmatprep.subr.mxu0 0.0
    %441 = vmatpush1.msra.mxu0 0.0
    %442 = vmatprep.subr.mxu0 0.0
    %443 = vmatpush1.msra.mxu0 0.0
    %444 = vmatprep.subr.mxu0 0.0
    %445 = vmatpush1.msra.mxu0 0.0
    %446 = vmatprep.subr.mxu0 0.0
    %447 = vmatpush1.msra.mxu0 0.0
    %448 = vmatprep.subr.mxu0 0.0
    %449 = vmatpush1.msra.mxu0 0.0
    %450 = vmatprep.subr.mxu0 0.0
    %451 = vmatpush1.msra.mxu0 0.0
    %452 = vmatprep.subr.mxu0 0.0
    %453 = vmatpush1.msra.mxu0 0.0
    %454 = vmatprep.mubr.f32.mxu0 0.0
    %455 = vmatmul.mubr.f32.gmra.mrb[0].mxu0 %v388
    %v456 = vpop.f32.mrb[0].mxu0
    %v457 = vadd.f32 0.0, %v456
    %v458 = vpop.f32.mrb[0].mxu0
    %459 = vdwg.mxu0
    %460 = vrot.lane.b32.xlu0 %v117, 112
    %v461 = vpop.permute.xlu0 %460
    %462 = vrot.lane.b32.xlu0 %v117, 80
    %v463 = vpop.permute.xlu0 %462
    %v464 = vsel %vm129, %v461, 0
    %v466 = vsel %vm129, %v463, 0
    %468 = vmatprep.subr.mxu0 0.0
    %469 = vmatpush1.xpose.msra.mxu0 %v466
    %470 = vmatprep.subr.mxu0 0.0
    %471 = vmatpush1.xpose.msra.mxu0 0.0
    %472 = vmatprep.subr.mxu0 0.0
    %473 = vmatpush1.xpose.msra.mxu0 0.0
    %474 = vmatprep.subr.mxu0 0.0
    %475 = vmatpush1.xpose.msra.mxu0 0.0
    %476 = vmatprep.subr.mxu0 0.0
    %477 = vmatpush1.xpose.msra.mxu0 0.0
    %478 = vmatprep.subr.mxu0 0.0
    %479 = vmatpush1.xpose.msra.mxu0 0.0
    %480 = vmatprep.subr.mxu0 0.0
    %481 = vmatpush1.xpose.msra.mxu0 0.0
    %482 = vmatprep.subr.mxu0 0.0
    %483 = vmatpush1.xpose.msra.mxu0 0.0
    %484 = vmatprep.subr.mxu0 0.0
    %485 = vmatpush1.xpose.msra.mxu0 0.0
    %486 = vmatprep.subr.mxu0 0.0
    %487 = vmatpush1.xpose.msra.mxu0 0.0
    %488 = vmatprep.subr.mxu0 0.0
    %489 = vmatpush1.xpose.msra.mxu0 0.0
    %490 = vmatprep.subr.mxu0 0.0
    %491 = vmatpush1.xpose.msra.mxu0 0.0
    %492 = vmatprep.subr.mxu0 0.0
    %493 = vmatpush1.xpose.msra.mxu0 0.0
    %494 = vmatprep.subr.mxu0 0.0
    %495 = vmatpush1.xpose.msra.mxu0 0.0
    %496 = vmatprep.subr.mxu0 0.0
    %497 = vmatpush1.xpose.msra.mxu0 0.0
    %498 = vmatprep.subr.mxu0 0.0
    %499 = vmatpush1.xpose.msra.mxu0 0.0
    %500 = vmatprep.subr.mxu0 0.0
    %501 = vmatpush1.xpose.msra.mxu0 0.0
    %502 = vmatprep.subr.mxu0 0.0
    %503 = vmatpush1.xpose.msra.mxu0 0.0
    %504 = vmatprep.subr.mxu0 0.0
    %505 = vmatpush1.xpose.msra.mxu0 0.0
    %506 = vmatprep.subr.mxu0 0.0
    %507 = vmatpush1.xpose.msra.mxu0 0.0
    %508 = vmatprep.subr.mxu0 0.0
    %509 = vmatpush1.xpose.msra.mxu0 0.0
    %510 = vmatprep.subr.mxu0 0.0
    %511 = vmatpush1.xpose.msra.mxu0 0.0
    %512 = vmatprep.subr.mxu0 0.0
    %513 = vmatpush1.xpose.msra.mxu0 0.0
    %514 = vmatprep.subr.mxu0 0.0
    %515 = vmatpush1.xpose.msra.mxu0 0.0
    %516 = vmatprep.subr.mxu0 0.0
    %517 = vmatpush1.xpose.msra.mxu0 0.0
    %518 = vmatprep.subr.mxu0 0.0
    %519 = vmatpush1.xpose.msra.mxu0 0.0
    %520 = vmatprep.subr.mxu0 0.0
    %521 = vmatpush1.xpose.msra.mxu0 0.0
    %522 = vmatprep.subr.mxu0 0.0
    %523 = vmatpush1.xpose.msra.mxu0 0.0
    %524 = vmatprep.subr.mxu0 0.0
    %525 = vmatpush1.xpose.msra.mxu0 0.0
    %526 = vmatprep.subr.mxu0 0.0
    %527 = vmatpush1.xpose.msra.mxu0 0.0
    %528 = vmatprep.subr.mxu0 0.0
    %529 = vmatpush1.xpose.msra.mxu0 0.0
    %530 = vmatprep.subr.mxu0 0.0
    %531 = vmatpush1.xpose.msra.mxu0 0.0
    %532 = vmatprep.mubr.f32.mxu0 0.0
    %533 = vmatmul.mubr.f32.gmra.mrb[0].mxu0 %v464
    %v534 = vpop.f32.mrb[0].mxu0
    %v535 = vadd.f32 0.0, %v534
    %v536 = vpop.f32.mrb[0].mxu0
    %537 = vdwg.mxu0
    %v538 = vsel %vm205, %v535, -1000000.0
    %v539 = vsel %vm129, %v538, -inf
    %540 = vmax.xlane.f32.xlu0 %v539
    %v541 = vpop.xlane.xlu0 %540
    %v542 = vsub.f32 %v538, %v541
    %v543 = vmul.f32 %v542, 1.442695
    %v544 = vpow.pop %v543
    %v545 = vsel %vm129, %v544, 0.0
    %546 = vadd.xlane.f32.xlu0 %v545
    %v547 = vpop.xlane.xlu0 %546
    %v548 = vrcp.pop %v547
    %v549 = vmul.f32 %v544, %v548
    %550 = vrot.lane.b32.xlu0 %v117, 48
    %v551 = vpop.permute.xlu0 %550
    %v554 = vsel %vm129, %v549, 0
    %556 = vmatprep.subr.mxu0 0.0
    %557 = vmatpush1.msra.mxu0 %v551
    %558 = vmatprep.subr.mxu0 0.0
    %559 = vmatpush1.msra.mxu0 0.0
    %560 = vmatprep.subr.mxu0 0.0
    %561 = vmatpush1.msra.mxu0 0.0
    %562 = vmatprep.subr.mxu0 0.0
    %563 = vmatpush1.msra.mxu0 0.0
    %564 = vmatprep.subr.mxu0 0.0
    %565 = vmatpush1.msra.mxu0 0.0
    %566 = vmatprep.subr.mxu0 0.0
    %567 = vmatpush1.msra.mxu0 0.0
    %568 = vmatprep.subr.mxu0 0.0
    %569 = vmatpush1.msra.mxu0 0.0
    %570 = vmatprep.subr.mxu0 0.0
    %571 = vmatpush1.msra.mxu0 0.0
    %572 = vmatprep.subr.mxu0 0.0
    %573 = vmatpush1.msra.mxu0 0.0
    %574 = vmatprep.subr.mxu0 0.0
    %575 = vmatpush1.msra.mxu0 0.0
    %576 = vmatprep.subr.mxu0 0.0
    %577 = vmatpush1.msra.mxu0 0.0
    %578 = vmatprep.subr.mxu0 0.0
    %579 = vmatpush1.msra.mxu0 0.0
    %580 = vmatprep.subr.mxu0 0.0
    %581 = vmatpush1.msra.mxu0 0.0
    %582 = vmatprep.subr.mxu0 0.0
    %583 = vmatpush1.msra.mxu0 0.0
    %584 = vmatprep.subr.mxu0 0.0
    %585 = vmatpush1.msra.mxu0 0.0
    %586 = vmatprep.subr.mxu0 0.0
    %587 = vmatpush1.msra.mxu0 0.0
    %588 = vmatprep.subr.mxu0 0.0
    %589 = vmatpush1.msra.mxu0 0.0
    %590 = vmatprep.subr.mxu0 0.0
    %591 = vmatpush1.msra.mxu0 0.0
    %592 = vmatprep.subr.mxu0 0.0
    %593 = vmatpush1.msra.mxu0 0.0
    %594 = vmatprep.subr.mxu0 0.0
    %595 = vmatpush1.msra.mxu0 0.0
    %596 = vmatprep.subr.mxu0 0.0
    %597 = vmatpush1.msra.mxu0 0.0
    %598 = vmatprep.subr.mxu0 0.0
    %599 = vmatpush1.msra.mxu0 0.0
    %600 = vmatprep.subr.mxu0 0.0
    %601 = vmatpush1.msra.mxu0 0.0
    %602 = vmatprep.subr.mxu0 0.0
    %603 = vmatpush1.msra.mxu0 0.0
    %604 = vmatprep.subr.mxu0 0.0
    %605 = vmatpush1.msra.mxu0 0.0
    %606 = vmatprep.subr.mxu0 0.0
    %607 = vmatpush1.msra.mxu0 0.0
    %608 = vmatprep.subr.mxu0 0.0
    %609 = vmatpush1.msra.mxu0 0.0
    %610 = vmatprep.subr.mxu0 0.0
    %611 = vmatpush1.msra.mxu0 0.0
    %612 = vmatprep.subr.mxu0 0.0
    %613 = vmatpush1.msra.mxu0 0.0
    %614 = vmatprep.subr.mxu0 0.0
    %615 = vmatpush1.msra.mxu0 0.0
    %616 = vmatprep.subr.mxu0 0.0
    %617 = vmatpush1.msra.mxu0 0.0
    %618 = vmatprep.subr.mxu0 0.0
    %619 = vmatpush1.msra.mxu0 0.0
    %620 = vmatprep.mubr.f32.mxu0 0.0
    %621 = vmatmul.mubr.f32.gmra.mrb[0].mxu0 %v554
    %v622 = vpop.f32.mrb[0].mxu0
    %v623 = vadd.f32 0.0, %v622
    %v624 = vpop.f32.mrb[0].mxu0
    %625 = vdwg.mxu0
    %626 = vrot.lane.b32.xlu0 %v117, 104
    %v627 = vpop.permute.xlu0 %626
    %628 = vrot.lane.b32.xlu0 %v117, 72
    %v629 = vpop.permute.xlu0 %628
    %v630 = vsel %vm129, %v627, 0
    %v632 = vsel %vm129, %v629, 0
    %634 = vmatprep.subr.mxu0 0.0
    %635 = vmatpush1.xpose.msra.mxu0 %v632
    %636 = vmatprep.subr.mxu0 0.0
    %637 = vmatpush1.xpose.msra.mxu0 0.0
    %638 = vmatprep.subr.mxu0 0.0
    %639 = vmatpush1.xpose.msra.mxu0 0.0
    %640 = vmatprep.subr.mxu0 0.0
    %641 = vmatpush1.xpose.msra.mxu0 0.0
    %642 = vmatprep.subr.mxu0 0.0
    %643 = vmatpush1.xpose.msra.mxu0 0.0
    %644 = vmatprep.subr.mxu0 0.0
    %645 = vmatpush1.xpose.msra.mxu0 0.0
    %646 = vmatprep.subr.mxu0 0.0
    %647 = vmatpush1.xpose.msra.mxu0 0.0
    %648 = vmatprep.subr.mxu0 0.0
    %649 = vmatpush1.xpose.msra.mxu0 0.0
    %650 = vmatprep.subr.mxu0 0.0
    %651 = vmatpush1.xpose.msra.mxu0 0.0
    %652 = vmatprep.subr.mxu0 0.0
    %653 = vmatpush1.xpose.msra.mxu0 0.0
    %654 = vmatprep.subr.mxu0 0.0
    %655 = vmatpush1.xpose.msra.mxu0 0.0
    %656 = vmatprep.subr.mxu0 0.0
    %657 = vmatpush1.xpose.msra.mxu0 0.0
    %658 = vmatprep.subr.mxu0 0.0
    %659 = vmatpush1.xpose.msra.mxu0 0.0
    %660 = vmatprep.subr.mxu0 0.0
    %661 = vmatpush1.xpose.msra.mxu0 0.0
    %662 = vmatprep.subr.mxu0 0.0
    %663 = vmatpush1.xpose.msra.mxu0 0.0
    %664 = vmatprep.subr.mxu0 0.0
    %665 = vmatpush1.xpose.msra.mxu0 0.0
    %666 = vmatprep.subr.mxu0 0.0
    %667 = vmatpush1.xpose.msra.mxu0 0.0
    %668 = vmatprep.subr.mxu0 0.0
    %669 = vmatpush1.xpose.msra.mxu0 0.0
    %670 = vmatprep.subr.mxu0 0.0
    %671 = vmatpush1.xpose.msra.mxu0 0.0
    %672 = vmatprep.subr.mxu0 0.0
    %673 = vmatpush1.xpose.msra.mxu0 0.0
    %674 = vmatprep.subr.mxu0 0.0
    %675 = vmatpush1.xpose.msra.mxu0 0.0
    %676 = vmatprep.subr.mxu0 0.0
    %677 = vmatpush1.xpose.msra.mxu0 0.0
    %678 = vmatprep.subr.mxu0 0.0
    %679 = vmatpush1.xpose.msra.mxu0 0.0
    %680 = vmatprep.subr.mxu0 0.0
    %681 = vmatpush1.xpose.msra.mxu0 0.0
    %682 = vmatprep.subr.mxu0 0.0
    %683 = vmatpush1.xpose.msra.mxu0 0.0
    %684 = vmatprep.subr.mxu0 0.0
    %685 = vmatpush1.xpose.msra.mxu0 0.0
    %686 = vmatprep.subr.mxu0 0.0
    %687 = vmatpush1.xpose.msra.mxu0 0.0
    %688 = vmatprep.subr.mxu0 0.0
    %689 = vmatpush1.xpose.msra.mxu0 0.0
    %690 = vmatprep.subr.mxu0 0.0
    %691 = vmatpush1.xpose.msra.mxu0 0.0
    %692 = vmatprep.subr.mxu0 0.0
    %693 = vmatpush1.xpose.msra.mxu0 0.0
    %694 = vmatprep.subr.mxu0 0.0
    %695 = vmatpush1.xpose.msra.mxu0 0.0
    %696 = vmatprep.subr.mxu0 0.0
    %697 = vmatpush1.xpose.msra.mxu0 0.0
    %698 = vmatprep.mubr.f32.mxu0 0.0
    %699 = vmatmul.mubr.f32.gmra.mrb[0].mxu0 %v630
    %v700 = vpop.f32.mrb[0].mxu0
    %v701 = vadd.f32 0.0, %v700
    %v702 = vpop.f32.mrb[0].mxu0
    %703 = vdwg.mxu0
    %v704 = vsel %vm205, %v701, -1000000.0
    %v705 = vsel %vm129, %v704, -inf
    %706 = vmax.xlane.f32.xlu0 %v705
    %v707 = vpop.xlane.xlu0 %706
    %v708 = vsub.f32 %v704, %v707
    %v709 = vmul.f32 %v708, 1.442695
    %v710 = vpow.pop %v709
    %v711 = vsel %vm129, %v710, 0.0
    %712 = vadd.xlane.f32.xlu0 %v711
    %v713 = vpop.xlane.xlu0 %712
    %v714 = vrcp.pop %v713
    %v715 = vmul.f32 %v710, %v714
    %716 = vrot.lane.b32.xlu0 %v117, 40
    %v717 = vpop.permute.xlu0 %716
    %v720 = vsel %vm129, %v715, 0
    %722 = vmatprep.subr.mxu0 0.0
    %723 = vmatpush1.msra.mxu0 %v717
    %724 = vmatprep.subr.mxu0 0.0
    %725 = vmatpush1.msra.mxu0 0.0
    %726 = vmatprep.subr.mxu0 0.0
    %727 = vmatpush1.msra.mxu0 0.0
    %728 = vmatprep.subr.mxu0 0.0
    %729 = vmatpush1.msra.mxu0 0.0
    %730 = vmatprep.subr.mxu0 0.0
    %731 = vmatpush1.msra.mxu0 0.0
    %732 = vmatprep.subr.mxu0 0.0
    %733 = vmatpush1.msra.mxu0 0.0
    %734 = vmatprep.subr.mxu0 0.0
    %735 = vmatpush1.msra.mxu0 0.0
    %736 = vmatprep.subr.mxu0 0.0
    %737 = vmatpush1.msra.mxu0 0.0
    %738 = vmatprep.subr.mxu0 0.0
    %739 = vmatpush1.msra.mxu0 0.0
    %740 = vmatprep.subr.mxu0 0.0
    %741 = vmatpush1.msra.mxu0 0.0
    %742 = vmatprep.subr.mxu0 0.0
    %743 = vmatpush1.msra.mxu0 0.0
    %744 = vmatprep.subr.mxu0 0.0
    %745 = vmatpush1.msra.mxu0 0.0
    %746 = vmatprep.subr.mxu0 0.0
    %747 = vmatpush1.msra.mxu0 0.0
    %748 = vmatprep.subr.mxu0 0.0
    %749 = vmatpush1.msra.mxu0 0.0
    %750 = vmatprep.subr.mxu0 0.0
    %751 = vmatpush1.msra.mxu0 0.0
    %752 = vmatprep.subr.mxu0 0.0
    %753 = vmatpush1.msra.mxu0 0.0
    %754 = vmatprep.subr.mxu0 0.0
    %755 = vmatpush1.msra.mxu0 0.0
    %756 = vmatprep.subr.mxu0 0.0
    %757 = vmatpush1.msra.mxu0 0.0
    %758 = vmatprep.subr.mxu0 0.0
    %759 = vmatpush1.msra.mxu0 0.0
    %760 = vmatprep.subr.mxu0 0.0
    %761 = vmatpush1.msra.mxu0 0.0
    %762 = vmatprep.subr.mxu0 0.0
    %763 = vmatpush1.msra.mxu0 0.0
    %764 = vmatprep.subr.mxu0 0.0
    %765 = vmatpush1.msra.mxu0 0.0
    %766 = vmatprep.subr.mxu0 0.0
    %767 = vmatpush1.msra.mxu0 0.0
    %768 = vmatprep.subr.mxu0 0.0
    %769 = vmatpush1.msra.mxu0 0.0
    %770 = vmatprep.subr.mxu0 0.0
    %771 = vmatpush1.msra.mxu0 0.0
    %772 = vmatprep.subr.mxu0 0.0
    %773 = vmatpush1.msra.mxu0 0.0
    %774 = vmatprep.subr.mxu0 0.0
    %775 = vmatpush1.msra.mxu0 0.0
    %776 = vmatprep.subr.mxu0 0.0
    %777 = vmatpush1.msra.mxu0 0.0
    %778 = vmatprep.subr.mxu0 0.0
    %779 = vmatpush1.msra.mxu0 0.0
    %780 = vmatprep.subr.mxu0 0.0
    %781 = vmatpush1.msra.mxu0 0.0
    %782 = vmatprep.subr.mxu0 0.0
    %783 = vmatpush1.msra.mxu0 0.0
    %784 = vmatprep.subr.mxu0 0.0
    %785 = vmatpush1.msra.mxu0 0.0
    %786 = vmatprep.mubr.f32.mxu0 0.0
    %787 = vmatmul.mubr.f32.gmra.mrb[0].mxu0 %v720
    %v788 = vpop.f32.mrb[0].mxu0
    %v789 = vadd.f32 0.0, %v788
    %v790 = vpop.f32.mrb[0].mxu0
    %791 = vdwg.mxu0
    %793 = vrot.lane.b32.xlu0 %v457, 8
    %v794 = vpop.permute.xlu0 %793
    %797 = vrot.lane.b32.xlu0 %v623, 16
    %v798 = vpop.permute.xlu0 %797
    %801 = vrot.lane.b32.xlu0 %v789, 24
    %v802 = vpop.permute.xlu0 %801
    %v804 = vsel %vm129, %v291, %v794
    %vm805 = vcmask 130048
    %v806 = vsel %vm805, %v804, %v798
    %vm807 = vcmask 195584
    %v808 = vsel %vm807, %v806, %v802
    %s809 = sld [smem:[#allocation3 + $0x1]]
    %811 = vrot.lane.b32.xlu0 %v120, 96
    %v812 = vpop.permute.xlu0 %811
    %v813 = vsel %vm129, %v120, 0
    %v815 = vsel %vm129, %v812, 0
    %817 = vmatprep.subr.mxu0 0.0
    %818 = vmatpush1.xpose.msra.mxu0 %v815
    %819 = vmatprep.subr.mxu0 0.0
    %820 = vmatpush1.xpose.msra.mxu0 0.0
    %821 = vmatprep.subr.mxu0 0.0
    %822 = vmatpush1.xpose.msra.mxu0 0.0
    %823 = vmatprep.subr.mxu0 0.0
    %824 = vmatpush1.xpose.msra.mxu0 0.0
    %825 = vmatprep.subr.mxu0 0.0
    %826 = vmatpush1.xpose.msra.mxu0 0.0
    %827 = vmatprep.subr.mxu0 0.0
    %828 = vmatpush1.xpose.msra.mxu0 0.0
    %829 = vmatprep.subr.mxu0 0.0
    %830 = vmatpush1.xpose.msra.mxu0 0.0
    %831 = vmatprep.subr.mxu0 0.0
    %832 = vmatpush1.xpose.msra.mxu0 0.0
    %833 = vmatprep.subr.mxu0 0.0
    %834 = vmatpush1.xpose.msra.mxu0 0.0
    %835 = vmatprep.subr.mxu0 0.0
    %836 = vmatpush1.xpose.msra.mxu0 0.0
    %837 = vmatprep.subr.mxu0 0.0
    %838 = vmatpush1.xpose.msra.mxu0 0.0
    %839 = vmatprep.subr.mxu0 0.0
    %840 = vmatpush1.xpose.msra.mxu0 0.0
    %841 = vmatprep.subr.mxu0 0.0
    %842 = vmatpush1.xpose.msra.mxu0 0.0
    %843 = vmatprep.subr.mxu0 0.0
    %844 = vmatpush1.xpose.msra.mxu0 0.0
    %845 = vmatprep.subr.mxu0 0.0
    %846 = vmatpush1.xpose.msra.mxu0 0.0
    %847 = vmatprep.subr.mxu0 0.0
    %848 = vmatpush1.xpose.msra.mxu0 0.0
    %849 = vmatprep.subr.mxu0 0.0
    %850 = vmatpush1.xpose.msra.mxu0 0.0
    %851 = vmatprep.subr.mxu0 0.0
    %852 = vmatpush1.xpose.msra.mxu0 0.0
    %853 = vmatprep.subr.mxu0 0.0
    %854 = vmatpush1.xpose.msra.mxu0 0.0
    %855 = vmatprep.subr.mxu0 0.0
    %856 = vmatpush1.xpose.msra.mxu0 0.0
    %857 = vmatprep.subr.mxu0 0.0
    %858 = vmatpush1.xpose.msra.mxu0 0.0
    %859 = vmatprep.subr.mxu0 0.0
    %860 = vmatpush1.xpose.msra.mxu0 0.0
    %861 = vmatprep.subr.mxu0 0.0
    %862 = vmatpush1.xpose.msra.mxu0 0.0
    %863 = vmatprep.subr.mxu0 0.0
    %864 = vmatpush1.xpose.msra.mxu0 0.0
    %865 = vmatprep.subr.mxu0 0.0
    %866 = vmatpush1.xpose.msra.mxu0 0.0
    %867 = vmatprep.subr.mxu0 0.0
    %868 = vmatpush1.xpose.msra.mxu0 0.0
    %869 = vmatprep.subr.mxu0 0.0
    %870 = vmatpush1.xpose.msra.mxu0 0.0
    %871 = vmatprep.subr.mxu0 0.0
    %872 = vmatpush1.xpose.msra.mxu0 0.0
    %873 = vmatprep.subr.mxu0 0.0
    %874 = vmatpush1.xpose.msra.mxu0 0.0
    %875 = vmatprep.subr.mxu0 0.0
    %876 = vmatpush1.xpose.msra.mxu0 0.0
    %877 = vmatprep.subr.mxu0 0.0
    %878 = vmatpush1.xpose.msra.mxu0 0.0
    %879 = vmatprep.subr.mxu0 0.0
    %880 = vmatpush1.xpose.msra.mxu0 0.0
    %881 = vmatprep.mubr.f32.mxu0 0.0
    %882 = vmatmul.mubr.f32.gmra.mrb[0].mxu0 %v813
    %v883 = vpop.f32.mrb[0].mxu0
    %v884 = vadd.f32 0.0, %v883
    %v885 = vpop.f32.mrb[0].mxu0
    %886 = vdwg.mxu0
    %v887 = vstv %s809
    %vm888 = vcmp.lt.s32.totalorder %v124, %v887
    %v889 = vsel %vm888, %v884, -1000000.0
    %v890 = vsel %vm129, %v889, -inf
    %891 = vmax.xlane.f32.xlu0 %v890
    %v892 = vpop.xlane.xlu0 %891
    %v893 = vsub.f32 %v889, %v892
    %v894 = vmul.f32 %v893, 1.442695
    %v895 = vpow.pop %v894
    %v896 = vsel %vm129, %v895, 0.0
    %897 = vadd.xlane.f32.xlu0 %v896
    %v898 = vpop.xlane.xlu0 %897
    %v899 = vrcp.pop %v898
    %v900 = vmul.f32 %v895, %v899
    %901 = vrot.lane.b32.xlu0 %v120, 64
    %v902 = vpop.permute.xlu0 %901
    %v905 = vsel %vm129, %v900, 0
    %907 = vmatprep.subr.mxu0 0.0
    %908 = vmatpush1.msra.mxu0 %v902
    %909 = vmatprep.subr.mxu0 0.0
    %910 = vmatpush1.msra.mxu0 0.0
    %911 = vmatprep.subr.mxu0 0.0
    %912 = vmatpush1.msra.mxu0 0.0
    %913 = vmatprep.subr.mxu0 0.0
    %914 = vmatpush1.msra.mxu0 0.0
    %915 = vmatprep.subr.mxu0 0.0
    %916 = vmatpush1.msra.mxu0 0.0
    %917 = vmatprep.subr.mxu0 0.0
    %918 = vmatpush1.msra.mxu0 0.0
    %919 = vmatprep.subr.mxu0 0.0
    %920 = vmatpush1.msra.mxu0 0.0
    %921 = vmatprep.subr.mxu0 0.0
    %922 = vmatpush1.msra.mxu0 0.0
    %923 = vmatprep.subr.mxu0 0.0
    %924 = vmatpush1.msra.mxu0 0.0
    %925 = vmatprep.subr.mxu0 0.0
    %926 = vmatpush1.msra.mxu0 0.0
    %927 = vmatprep.subr.mxu0 0.0
    %928 = vmatpush1.msra.mxu0 0.0
    %929 = vmatprep.subr.mxu0 0.0
    %930 = vmatpush1.msra.mxu0 0.0
    %931 = vmatprep.subr.mxu0 0.0
    %932 = vmatpush1.msra.mxu0 0.0
    %933 = vmatprep.subr.mxu0 0.0
    %934 = vmatpush1.msra.mxu0 0.0
    %935 = vmatprep.subr.mxu0 0.0
    %936 = vmatpush1.msra.mxu0 0.0
    %937 = vmatprep.subr.mxu0 0.0
    %938 = vmatpush1.msra.mxu0 0.0
    %939 = vmatprep.subr.mxu0 0.0
    %940 = vmatpush1.msra.mxu0 0.0
    %941 = vmatprep.subr.mxu0 0.0
    %942 = vmatpush1.msra.mxu0 0.0
    %943 = vmatprep.subr.mxu0 0.0
    %944 = vmatpush1.msra.mxu0 0.0
    %945 = vmatprep.subr.mxu0 0.0
    %946 = vmatpush1.msra.mxu0 0.0
    %947 = vmatprep.subr.mxu0 0.0
    %948 = vmatpush1.msra.mxu0 0.0
    %949 = vmatprep.subr.mxu0 0.0
    %950 = vmatpush1.msra.mxu0 0.0
    %951 = vmatprep.subr.mxu0 0.0
    %952 = vmatpush1.msra.mxu0 0.0
    %953 = vmatprep.subr.mxu0 0.0
    %954 = vmatpush1.msra.mxu0 0.0
    %955 = vmatprep.subr.mxu0 0.0
    %956 = vmatpush1.msra.mxu0 0.0
    %957 = vmatprep.subr.mxu0 0.0
    %958 = vmatpush1.msra.mxu0 0.0
    %959 = vmatprep.subr.mxu0 0.0
    %960 = vmatpush1.msra.mxu0 0.0
    %961 = vmatprep.subr.mxu0 0.0
    %962 = vmatpush1.msra.mxu0 0.0
    %963 = vmatprep.subr.mxu0 0.0
    %964 = vmatpush1.msra.mxu0 0.0
    %965 = vmatprep.subr.mxu0 0.0
    %966 = vmatpush1.msra.mxu0 0.0
    %967 = vmatprep.subr.mxu0 0.0
    %968 = vmatpush1.msra.mxu0 0.0
    %969 = vmatprep.subr.mxu0 0.0
    %970 = vmatpush1.msra.mxu0 0.0
    %971 = vmatprep.mubr.f32.mxu0 0.0
    %972 = vmatmul.mubr.f32.gmra.mrb[0].mxu0 %v905
    %v973 = vpop.f32.mrb[0].mxu0
    %v974 = vadd.f32 0.0, %v973
    %v975 = vpop.f32.mrb[0].mxu0
    %976 = vdwg.mxu0
    %977 = vrot.lane.b32.xlu0 %v120, 120
    %v978 = vpop.permute.xlu0 %977
    %979 = vrot.lane.b32.xlu0 %v120, 88
    %v980 = vpop.permute.xlu0 %979
    %v981 = vsel %vm129, %v978, 0
    %v983 = vsel %vm129, %v980, 0
    %985 = vmatprep.subr.mxu0 0.0
    %986 = vmatpush1.xpose.msra.mxu0 %v983
    %987 = vmatprep.subr.mxu0 0.0
    %988 = vmatpush1.xpose.msra.mxu0 0.0
    %989 = vmatprep.subr.mxu0 0.0
    %990 = vmatpush1.xpose.msra.mxu0 0.0
    %991 = vmatprep.subr.mxu0 0.0
    %992 = vmatpush1.xpose.msra.mxu0 0.0
    %993 = vmatprep.subr.mxu0 0.0
    %994 = vmatpush1.xpose.msra.mxu0 0.0
    %995 = vmatprep.subr.mxu0 0.0
    %996 = vmatpush1.xpose.msra.mxu0 0.0
    %997 = vmatprep.subr.mxu0 0.0
    %998 = vmatpush1.xpose.msra.mxu0 0.0
    %999 = vmatprep.subr.mxu0 0.0
    %1000 = vmatpush1.xpose.msra.mxu0 0.0
    %1001 = vmatprep.subr.mxu0 0.0
    %1002 = vmatpush1.xpose.msra.mxu0 0.0
    %1003 = vmatprep.subr.mxu0 0.0
    %1004 = vmatpush1.xpose.msra.mxu0 0.0
    %1005 = vmatprep.subr.mxu0 0.0
    %1006 = vmatpush1.xpose.msra.mxu0 0.0
    %1007 = vmatprep.subr.mxu0 0.0
    %1008 = vmatpush1.xpose.msra.mxu0 0.0
    %1009 = vmatprep.subr.mxu0 0.0
    %1010 = vmatpush1.xpose.msra.mxu0 0.0
    %1011 = vmatprep.subr.mxu0 0.0
    %1012 = vmatpush1.xpose.msra.mxu0 0.0
    %1013 = vmatprep.subr.mxu0 0.0
    %1014 = vmatpush1.xpose.msra.mxu0 0.0
    %1015 = vmatprep.subr.mxu0 0.0
    %1016 = vmatpush1.xpose.msra.mxu0 0.0
    %1017 = vmatprep.subr.mxu0 0.0
    %1018 = vmatpush1.xpose.msra.mxu0 0.0
    %1019 = vmatprep.subr.mxu0 0.0
    %1020 = vmatpush1.xpose.msra.mxu0 0.0
    %1021 = vmatprep.subr.mxu0 0.0
    %1022 = vmatpush1.xpose.msra.mxu0 0.0
    %1023 = vmatprep.subr.mxu0 0.0
    %1024 = vmatpush1.xpose.msra.mxu0 0.0
    %1025 = vmatprep.subr.mxu0 0.0
    %1026 = vmatpush1.xpose.msra.mxu0 0.0
    %1027 = vmatprep.subr.mxu0 0.0
    %1028 = vmatpush1.xpose.msra.mxu0 0.0
    %1029 = vmatprep.subr.mxu0 0.0
    %1030 = vmatpush1.xpose.msra.mxu0 0.0
    %1031 = vmatprep.subr.mxu0 0.0
    %1032 = vmatpush1.xpose.msra.mxu0 0.0
    %1033 = vmatprep.subr.mxu0 0.0
    %1034 = vmatpush1.xpose.msra.mxu0 0.0
    %1035 = vmatprep.subr.mxu0 0.0
    %1036 = vmatpush1.xpose.msra.mxu0 0.0
    %1037 = vmatprep.subr.mxu0 0.0
    %1038 = vmatpush1.xpose.msra.mxu0 0.0
    %1039 = vmatprep.subr.mxu0 0.0
    %1040 = vmatpush1.xpose.msra.mxu0 0.0
    %1041 = vmatprep.subr.mxu0 0.0
    %1042 = vmatpush1.xpose.msra.mxu0 0.0
    %1043 = vmatprep.subr.mxu0 0.0
    %1044 = vmatpush1.xpose.msra.mxu0 0.0
    %1045 = vmatprep.subr.mxu0 0.0
    %1046 = vmatpush1.xpose.msra.mxu0 0.0
    %1047 = vmatprep.subr.mxu0 0.0
    %1048 = vmatpush1.xpose.msra.mxu0 0.0
    %1049 = vmatprep.mubr.f32.mxu0 0.0
    %1050 = vmatmul.mubr.f32.gmra.mrb[0].mxu0 %v981
    %v1051 = vpop.f32.mrb[0].mxu0
    %v1052 = vadd.f32 0.0, %v1051
    %v1053 = vpop.f32.mrb[0].mxu0
    %1054 = vdwg.mxu0
    %v1055 = vsel %vm888, %v1052, -1000000.0
    %v1056 = vsel %vm129, %v1055, -inf
    %1057 = vmax.xlane.f32.xlu0 %v1056
    %v1058 = vpop.xlane.xlu0 %1057
    %v1059 = vsub.f32 %v1055, %v1058
    %v1060 = vmul.f32 %v1059, 1.442695
    %v1061 = vpow.pop %v1060
    %v1062 = vsel %vm129, %v1061, 0.0
    %1063 = vadd.xlane.f32.xlu0 %v1062
    %v1064 = vpop.xlane.xlu0 %1063
    %v1065 = vrcp.pop %v1064
    %v1066 = vmul.f32 %v1061, %v1065
    %1067 = vrot.lane.b32.xlu0 %v120, 56
    %v1068 = vpop.permute.xlu0 %1067
    %v1071 = vsel %vm129, %v1066, 0
    %1073 = vmatprep.subr.mxu0 0.0
    %1074 = vmatpush1.msra.mxu0 %v1068
    %1075 = vmatprep.subr.mxu0 0.0
    %1076 = vmatpush1.msra.mxu0 0.0
    %1077 = vmatprep.subr.mxu0 0.0
    %1078 = vmatpush1.msra.mxu0 0.0
    %1079 = vmatprep.subr.mxu0 0.0
    %1080 = vmatpush1.msra.mxu0 0.0
    %1081 = vmatprep.subr.mxu0 0.0
    %1082 = vmatpush1.msra.mxu0 0.0
    %1083 = vmatprep.subr.mxu0 0.0
    %1084 = vmatpush1.msra.mxu0 0.0
    %1085 = vmatprep.subr.mxu0 0.0
    %1086 = vmatpush1.msra.mxu0 0.0
    %1087 = vmatprep.subr.mxu0 0.0
    %1088 = vmatpush1.msra.mxu0 0.0
    %1089 = vmatprep.subr.mxu0 0.0
    %1090 = vmatpush1.msra.mxu0 0.0
    %1091 = vmatprep.subr.mxu0 0.0
    %1092 = vmatpush1.msra.mxu0 0.0
    %1093 = vmatprep.subr.mxu0 0.0
    %1094 = vmatpush1.msra.mxu0 0.0
    %1095 = vmatprep.subr.mxu0 0.0
    %1096 = vmatpush1.msra.mxu0 0.0
    %1097 = vmatprep.subr.mxu0 0.0
    %1098 = vmatpush1.msra.mxu0 0.0
    %1099 = vmatprep.subr.mxu0 0.0
    %1100 = vmatpush1.msra.mxu0 0.0
    %1101 = vmatprep.subr.mxu0 0.0
    %1102 = vmatpush1.msra.mxu0 0.0
    %1103 = vmatprep.subr.mxu0 0.0
    %1104 = vmatpush1.msra.mxu0 0.0
    %1105 = vmatprep.subr.mxu0 0.0
    %1106 = vmatpush1.msra.mxu0 0.0
    %1107 = vmatprep.subr.mxu0 0.0
    %1108 = vmatpush1.msra.mxu0 0.0
    %1109 = vmatprep.subr.mxu0 0.0
    %1110 = vmatpush1.msra.mxu0 0.0
    %1111 = vmatprep.subr.mxu0 0.0
    %1112 = vmatpush1.msra.mxu0 0.0
    %1113 = vmatprep.subr.mxu0 0.0
    %1114 = vmatpush1.msra.mxu0 0.0
    %1115 = vmatprep.subr.mxu0 0.0
    %1116 = vmatpush1.msra.mxu0 0.0
    %1117 = vmatprep.subr.mxu0 0.0
    %1118 = vmatpush1.msra.mxu0 0.0
    %1119 = vmatprep.subr.mxu0 0.0
    %1120 = vmatpush1.msra.mxu0 0.0
    %1121 = vmatprep.subr.mxu0 0.0
    %1122 = vmatpush1.msra.mxu0 0.0
    %1123 = vmatprep.subr.mxu0 0.0
    %1124 = vmatpush1.msra.mxu0 0.0
    %1125 = vmatprep.subr.mxu0 0.0
    %1126 = vmatpush1.msra.mxu0 0.0
    %1127 = vmatprep.subr.mxu0 0.0
    %1128 = vmatpush1.msra.mxu0 0.0
    %1129 = vmatprep.subr.mxu0 0.0
    %1130 = vmatpush1.msra.mxu0 0.0
    %1131 = vmatprep.subr.mxu0 0.0
    %1132 = vmatpush1.msra.mxu0 0.0
    %1133 = vmatprep.subr.mxu0 0.0
    %1134 = vmatpush1.msra.mxu0 0.0
    %1135 = vmatprep.subr.mxu0 0.0
    %1136 = vmatpush1.msra.mxu0 0.0
    %1137 = vmatprep.mubr.f32.mxu0 0.0
    %1138 = vmatmul.mubr.f32.gmra.mrb[0].mxu0 %v1071
    %v1139 = vpop.f32.mrb[0].mxu0
    %v1140 = vadd.f32 0.0, %v1139
    %v1141 = vpop.f32.mrb[0].mxu0
    %1142 = vdwg.mxu0
    %1143 = vrot.lane.b32.xlu0 %v120, 112
    %v1144 = vpop.permute.xlu0 %1143
    %1145 = vrot.lane.b32.xlu0 %v120, 80
    %v1146 = vpop.permute.xlu0 %1145
    %v1147 = vsel %vm129, %v1144, 0
    %v1149 = vsel %vm129, %v1146, 0
    %1151 = vmatprep.subr.mxu0 0.0
    %1152 = vmatpush1.xpose.msra.mxu0 %v1149
    %1153 = vmatprep.subr.mxu0 0.0
    %1154 = vmatpush1.xpose.msra.mxu0 0.0
    %1155 = vmatprep.subr.mxu0 0.0
    %1156 = vmatpush1.xpose.msra.mxu0 0.0
    %1157 = vmatprep.subr.mxu0 0.0
    %1158 = vmatpush1.xpose.msra.mxu0 0.0
    %1159 = vmatprep.subr.mxu0 0.0
    %1160 = vmatpush1.xpose.msra.mxu0 0.0
    %1161 = vmatprep.subr.mxu0 0.0
    %1162 = vmatpush1.xpose.msra.mxu0 0.0
    %1163 = vmatprep.subr.mxu0 0.0
    %1164 = vmatpush1.xpose.msra.mxu0 0.0
    %1165 = vmatprep.subr.mxu0 0.0
    %1166 = vmatpush1.xpose.msra.mxu0 0.0
    %1167 = vmatprep.subr.mxu0 0.0
    %1168 = vmatpush1.xpose.msra.mxu0 0.0
    %1169 = vmatprep.subr.mxu0 0.0
    %1170 = vmatpush1.xpose.msra.mxu0 0.0
    %1171 = vmatprep.subr.mxu0 0.0
    %1172 = vmatpush1.xpose.msra.mxu0 0.0
    %1173 = vmatprep.subr.mxu0 0.0
    %1174 = vmatpush1.xpose.msra.mxu0 0.0
    %1175 = vmatprep.subr.mxu0 0.0
    %1176 = vmatpush1.xpose.msra.mxu0 0.0
    %1177 = vmatprep.subr.mxu0 0.0
    %1178 = vmatpush1.xpose.msra.mxu0 0.0
    %1179 = vmatprep.subr.mxu0 0.0
    %1180 = vmatpush1.xpose.msra.mxu0 0.0
    %1181 = vmatprep.subr.mxu0 0.0
    %1182 = vmatpush1.xpose.msra.mxu0 0.0
    %1183 = vmatprep.subr.mxu0 0.0
    %1184 = vmatpush1.xpose.msra.mxu0 0.0
    %1185 = vmatprep.subr.mxu0 0.0
    %1186 = vmatpush1.xpose.msra.mxu0 0.0
    %1187 = vmatprep.subr.mxu0 0.0
    %1188 = vmatpush1.xpose.msra.mxu0 0.0
    %1189 = vmatprep.subr.mxu0 0.0
    %1190 = vmatpush1.xpose.msra.mxu0 0.0
    %1191 = vmatprep.subr.mxu0 0.0
    %1192 = vmatpush1.xpose.msra.mxu0 0.0
    %1193 = vmatprep.subr.mxu0 0.0
    %1194 = vmatpush1.xpose.msra.mxu0 0.0
    %1195 = vmatprep.subr.mxu0 0.0
    %1196 = vmatpush1.xpose.msra.mxu0 0.0
    %1197 = vmatprep.subr.mxu0 0.0
    %1198 = vmatpush1.xpose.msra.mxu0 0.0
    %1199 = vmatprep.subr.mxu0 0.0
    %1200 = vmatpush1.xpose.msra.mxu0 0.0
    %1201 = vmatprep.subr.mxu0 0.0
    %1202 = vmatpush1.xpose.msra.mxu0 0.0
    %1203 = vmatprep.subr.mxu0 0.0
    %1204 = vmatpush1.xpose.msra.mxu0 0.0
    %1205 = vmatprep.subr.mxu0 0.0
    %1206 = vmatpush1.xpose.msra.mxu0 0.0
    %1207 = vmatprep.subr.mxu0 0.0
    %1208 = vmatpush1.xpose.msra.mxu0 0.0
    %1209 = vmatprep.subr.mxu0 0.0
    %1210 = vmatpush1.xpose.msra.mxu0 0.0
    %1211 = vmatprep.subr.mxu0 0.0
    %1212 = vmatpush1.xpose.msra.mxu0 0.0
    %1213 = vmatprep.subr.mxu0 0.0
    %1214 = vmatpush1.xpose.msra.mxu0 0.0
    %1215 = vmatprep.mubr.f32.mxu0 0.0
    %1216 = vmatmul.mubr.f32.gmra.mrb[0].mxu0 %v1147
    %v1217 = vpop.f32.mrb[0].mxu0
    %v1218 = vadd.f32 0.0, %v1217
    %v1219 = vpop.f32.mrb[0].mxu0
    %1220 = vdwg.mxu0
    %v1221 = vsel %vm888, %v1218, -1000000.0
    %v1222 = vsel %vm129, %v1221, -inf
    %1223 = vmax.xlane.f32.xlu0 %v1222
    %v1224 = vpop.xlane.xlu0 %1223
    %v1225 = vsub.f32 %v1221, %v1224
    %v1226 = vmul.f32 %v1225, 1.442695
    %v1227 = vpow.pop %v1226
    %v1228 = vsel %vm129, %v1227, 0.0
    %1229 = vadd.xlane.f32.xlu0 %v1228
    %v1230 = vpop.xlane.xlu0 %1229
    %v1231 = vrcp.pop %v1230
    %v1232 = vmul.f32 %v1227, %v1231
    %1233 = vrot.lane.b32.xlu0 %v120, 48
    %v1234 = vpop.permute.xlu0 %1233
    %v1237 = vsel %vm129, %v1232, 0
    %1239 = vmatprep.subr.mxu0 0.0
    %1240 = vmatpush1.msra.mxu0 %v1234
    %1241 = vmatprep.subr.mxu0 0.0
    %1242 = vmatpush1.msra.mxu0 0.0
    %1243 = vmatprep.subr.mxu0 0.0
    %1244 = vmatpush1.msra.mxu0 0.0
    %1245 = vmatprep.subr.mxu0 0.0
    %1246 = vmatpush1.msra.mxu0 0.0
    %1247 = vmatprep.subr.mxu0 0.0
    %1248 = vmatpush1.msra.mxu0 0.0
    %1249 = vmatprep.subr.mxu0 0.0
    %1250 = vmatpush1.msra.mxu0 0.0
    %1251 = vmatprep.subr.mxu0 0.0
    %1252 = vmatpush1.msra.mxu0 0.0
    %1253 = vmatprep.subr.mxu0 0.0
    %1254 = vmatpush1.msra.mxu0 0.0
    %1255 = vmatprep.subr.mxu0 0.0
    %1256 = vmatpush1.msra.mxu0 0.0
    %1257 = vmatprep.subr.mxu0 0.0
    %1258 = vmatpush1.msra.mxu0 0.0
    %1259 = vmatprep.subr.mxu0 0.0
    %1260 = vmatpush1.msra.mxu0 0.0
    %1261 = vmatprep.subr.mxu0 0.0
    %1262 = vmatpush1.msra.mxu0 0.0
    %1263 = vmatprep.subr.mxu0 0.0
    %1264 = vmatpush1.msra.mxu0 0.0
    %1265 = vmatprep.subr.mxu0 0.0
    %1266 = vmatpush1.msra.mxu0 0.0
    %1267 = vmatprep.subr.mxu0 0.0
    %1268 = vmatpush1.msra.mxu0 0.0
    %1269 = vmatprep.subr.mxu0 0.0
    %1270 = vmatpush1.msra.mxu0 0.0
    %1271 = vmatprep.subr.mxu0 0.0
    %1272 = vmatpush1.msra.mxu0 0.0
    %1273 = vmatprep.subr.mxu0 0.0
    %1274 = vmatpush1.msra.mxu0 0.0
    %1275 = vmatprep.subr.mxu0 0.0
    %1276 = vmatpush1.msra.mxu0 0.0
    %1277 = vmatprep.subr.mxu0 0.0
    %1278 = vmatpush1.msra.mxu0 0.0
    %1279 = vmatprep.subr.mxu0 0.0
    %1280 = vmatpush1.msra.mxu0 0.0
    %1281 = vmatprep.subr.mxu0 0.0
    %1282 = vmatpush1.msra.mxu0 0.0
    %1283 = vmatprep.subr.mxu0 0.0
    %1284 = vmatpush1.msra.mxu0 0.0
    %1285 = vmatprep.subr.mxu0 0.0
    %1286 = vmatpush1.msra.mxu0 0.0
    %1287 = vmatprep.subr.mxu0 0.0
    %1288 = vmatpush1.msra.mxu0 0.0
    %1289 = vmatprep.subr.mxu0 0.0
    %1290 = vmatpush1.msra.mxu0 0.0
    %1291 = vmatprep.subr.mxu0 0.0
    %1292 = vmatpush1.msra.mxu0 0.0
    %1293 = vmatprep.subr.mxu0 0.0
    %1294 = vmatpush1.msra.mxu0 0.0
    %1295 = vmatprep.subr.mxu0 0.0
    %1296 = vmatpush1.msra.mxu0 0.0
    %1297 = vmatprep.subr.mxu0 0.0
    %1298 = vmatpush1.msra.mxu0 0.0
    %1299 = vmatprep.subr.mxu0 0.0
    %1300 = vmatpush1.msra.mxu0 0.0
    %1301 = vmatprep.subr.mxu0 0.0
    %1302 = vmatpush1.msra.mxu0 0.0
    %1303 = vmatprep.mubr.f32.mxu0 0.0
    %1304 = vmatmul.mubr.f32.gmra.mrb[0].mxu0 %v1237
    %v1305 = vpop.f32.mrb[0].mxu0
    %v1306 = vadd.f32 0.0, %v1305
    %v1307 = vpop.f32.mrb[0].mxu0
    %1308 = vdwg.mxu0
    %1309 = vrot.lane.b32.xlu0 %v120, 104
    %v1310 = vpop.permute.xlu0 %1309
    %1311 = vrot.lane.b32.xlu0 %v120, 72
    %v1312 = vpop.permute.xlu0 %1311
    %v1313 = vsel %vm129, %v1310, 0
    %v1315 = vsel %vm129, %v1312, 0
    %1317 = vmatprep.subr.mxu0 0.0
    %1318 = vmatpush1.xpose.msra.mxu0 %v1315
    %1319 = vmatprep.subr.mxu0 0.0
    %1320 = vmatpush1.xpose.msra.mxu0 0.0
    %1321 = vmatprep.subr.mxu0 0.0
    %1322 = vmatpush1.xpose.msra.mxu0 0.0
    %1323 = vmatprep.subr.mxu0 0.0
    %1324 = vmatpush1.xpose.msra.mxu0 0.0
    %1325 = vmatprep.subr.mxu0 0.0
    %1326 = vmatpush1.xpose.msra.mxu0 0.0
    %1327 = vmatprep.subr.mxu0 0.0
    %1328 = vmatpush1.xpose.msra.mxu0 0.0
    %1329 = vmatprep.subr.mxu0 0.0
    %1330 = vmatpush1.xpose.msra.mxu0 0.0
    %1331 = vmatprep.subr.mxu0 0.0
    %1332 = vmatpush1.xpose.msra.mxu0 0.0
    %1333 = vmatprep.subr.mxu0 0.0
    %1334 = vmatpush1.xpose.msra.mxu0 0.0
    %1335 = vmatprep.subr.mxu0 0.0
    %1336 = vmatpush1.xpose.msra.mxu0 0.0
    %1337 = vmatprep.subr.mxu0 0.0
    %1338 = vmatpush1.xpose.msra.mxu0 0.0
    %1339 = vmatprep.subr.mxu0 0.0
    %1340 = vmatpush1.xpose.msra.mxu0 0.0
    %1341 = vmatprep.subr.mxu0 0.0
    %1342 = vmatpush1.xpose.msra.mxu0 0.0
    %1343 = vmatprep.subr.mxu0 0.0
    %1344 = vmatpush1.xpose.msra.mxu0 0.0
    %1345 = vmatprep.subr.mxu0 0.0
    %1346 = vmatpush1.xpose.msra.mxu0 0.0
    %1347 = vmatprep.subr.mxu0 0.0
    %1348 = vmatpush1.xpose.msra.mxu0 0.0
    %1349 = vmatprep.subr.mxu0 0.0
    %1350 = vmatpush1.xpose.msra.mxu0 0.0
    %1351 = vmatprep.subr.mxu0 0.0
    %1352 = vmatpush1.xpose.msra.mxu0 0.0
    %1353 = vmatprep.subr.mxu0 0.0
    %1354 = vmatpush1.xpose.msra.mxu0 0.0
    %1355 = vmatprep.subr.mxu0 0.0
    %1356 = vmatpush1.xpose.msra.mxu0 0.0
    %1357 = vmatprep.subr.mxu0 0.0
    %1358 = vmatpush1.xpose.msra.mxu0 0.0
    %1359 = vmatprep.subr.mxu0 0.0
    %1360 = vmatpush1.xpose.msra.mxu0 0.0
    %1361 = vmatprep.subr.mxu0 0.0
    %1362 = vmatpush1.xpose.msra.mxu0 0.0
    %1363 = vmatprep.subr.mxu0 0.0
    %1364 = vmatpush1.xpose.msra.mxu0 0.0
    %1365 = vmatprep.subr.mxu0 0.0
    %1366 = vmatpush1.xpose.msra.mxu0 0.0
    %1367 = vmatprep.subr.mxu0 0.0
    %1368 = vmatpush1.xpose.msra.mxu0 0.0
    %1369 = vmatprep.subr.mxu0 0.0
    %1370 = vmatpush1.xpose.msra.mxu0 0.0
    %1371 = vmatprep.subr.mxu0 0.0
    %1372 = vmatpush1.xpose.msra.mxu0 0.0
    %1373 = vmatprep.subr.mxu0 0.0
    %1374 = vmatpush1.xpose.msra.mxu0 0.0
    %1375 = vmatprep.subr.mxu0 0.0
    %1376 = vmatpush1.xpose.msra.mxu0 0.0
    %1377 = vmatprep.subr.mxu0 0.0
    %1378 = vmatpush1.xpose.msra.mxu0 0.0
    %1379 = vmatprep.subr.mxu0 0.0
    %1380 = vmatpush1.xpose.msra.mxu0 0.0
    %1381 = vmatprep.mubr.f32.mxu0 0.0
    %1382 = vmatmul.mubr.f32.gmra.mrb[0].mxu0 %v1313
    %v1383 = vpop.f32.mrb[0].mxu0
    %v1384 = vadd.f32 0.0, %v1383
    %v1385 = vpop.f32.mrb[0].mxu0
    %1386 = vdwg.mxu0
    %v1387 = vsel %vm888, %v1384, -1000000.0
    %v1388 = vsel %vm129, %v1387, -inf
    %1389 = vmax.xlane.f32.xlu0 %v1388
    %v1390 = vpop.xlane.xlu0 %1389
    %v1391 = vsub.f32 %v1387, %v1390
    %v1392 = vmul.f32 %v1391, 1.442695
    %v1393 = vpow.pop %v1392
    %v1394 = vsel %vm129, %v1393, 0.0
    %1395 = vadd.xlane.f32.xlu0 %v1394
    %v1396 = vpop.xlane.xlu0 %1395
    %v1397 = vrcp.pop %v1396
    %v1398 = vmul.f32 %v1393, %v1397
    %1399 = vrot.lane.b32.xlu0 %v120, 40
    %v1400 = vpop.permute.xlu0 %1399
    %v1403 = vsel %vm129, %v1398, 0
    %1405 = vmatprep.subr.mxu0 0.0
    %1406 = vmatpush1.msra.mxu0 %v1400
    %1407 = vmatprep.subr.mxu0 0.0
    %1408 = vmatpush1.msra.mxu0 0.0
    %1409 = vmatprep.subr.mxu0 0.0
    %1410 = vmatpush1.msra.mxu0 0.0
    %1411 = vmatprep.subr.mxu0 0.0
    %1412 = vmatpush1.msra.mxu0 0.0
    %1413 = vmatprep.subr.mxu0 0.0
    %1414 = vmatpush1.msra.mxu0 0.0
    %1415 = vmatprep.subr.mxu0 0.0
    %1416 = vmatpush1.msra.mxu0 0.0
    %1417 = vmatprep.subr.mxu0 0.0
    %1418 = vmatpush1.msra.mxu0 0.0
    %1419 = vmatprep.subr.mxu0 0.0
    %1420 = vmatpush1.msra.mxu0 0.0
    %1421 = vmatprep.subr.mxu0 0.0
    %1422 = vmatpush1.msra.mxu0 0.0
    %1423 = vmatprep.subr.mxu0 0.0
    %1424 = vmatpush1.msra.mxu0 0.0
    %1425 = vmatprep.subr.mxu0 0.0
    %1426 = vmatpush1.msra.mxu0 0.0
    %1427 = vmatprep.subr.mxu0 0.0
    %1428 = vmatpush1.msra.mxu0 0.0
    %1429 = vmatprep.subr.mxu0 0.0
    %1430 = vmatpush1.msra.mxu0 0.0
    %1431 = vmatprep.subr.mxu0 0.0
    %1432 = vmatpush1.msra.mxu0 0.0
    %1433 = vmatprep.subr.mxu0 0.0
    %1434 = vmatpush1.msra.mxu0 0.0
    %1435 = vmatprep.subr.mxu0 0.0
    %1436 = vmatpush1.msra.mxu0 0.0
    %1437 = vmatprep.subr.mxu0 0.0
    %1438 = vmatpush1.msra.mxu0 0.0
    %1439 = vmatprep.subr.mxu0 0.0
    %1440 = vmatpush1.msra.mxu0 0.0
    %1441 = vmatprep.subr.mxu0 0.0
    %1442 = vmatpush1.msra.mxu0 0.0
    %1443 = vmatprep.subr.mxu0 0.0
    %1444 = vmatpush1.msra.mxu0 0.0
    %1445 = vmatprep.subr.mxu0 0.0
    %1446 = vmatpush1.msra.mxu0 0.0
    %1447 = vmatprep.subr.mxu0 0.0
    %1448 = vmatpush1.msra.mxu0 0.0
    %1449 = vmatprep.subr.mxu0 0.0
    %1450 = vmatpush1.msra.mxu0 0.0
    %1451 = vmatprep.subr.mxu0 0.0
    %1452 = vmatpush1.msra.mxu0 0.0
    %1453 = vmatprep.subr.mxu0 0.0
    %1454 = vmatpush1.msra.mxu0 0.0
    %1455 = vmatprep.subr.mxu0 0.0
    %1456 = vmatpush1.msra.mxu0 0.0
    %1457 = vmatprep.subr.mxu0 0.0
    %1458 = vmatpush1.msra.mxu0 0.0
    %1459 = vmatprep.subr.mxu0 0.0
    %1460 = vmatpush1.msra.mxu0 0.0
    %1461 = vmatprep.subr.mxu0 0.0
    %1462 = vmatpush1.msra.mxu0 0.0
    %1463 = vmatprep.subr.mxu0 0.0
    %1464 = vmatpush1.msra.mxu0 0.0
    %1465 = vmatprep.subr.mxu0 0.0
    %1466 = vmatpush1.msra.mxu0 0.0
    %1467 = vmatprep.subr.mxu0 0.0
    %1468 = vmatpush1.msra.mxu0 0.0
    %1469 = vmatprep.mubr.f32.mxu0 0.0
    %1470 = vmatmul.mubr.f32.gmra.mrb[0].mxu0 %v1403
    %v1471 = vpop.f32.mrb[0].mxu0
    %v1472 = vadd.f32 0.0, %v1471
    %v1473 = vpop.f32.mrb[0].mxu0
    %1474 = vdwg.mxu0
    %1476 = vrot.lane.b32.xlu0 %v1140, 8
    %v1477 = vpop.permute.xlu0 %1476
    %1480 = vrot.lane.b32.xlu0 %v1306, 16
    %v1481 = vpop.permute.xlu0 %1480
    %1484 = vrot.lane.b32.xlu0 %v1472, 24
    %v1485 = vpop.permute.xlu0 %1484
    %v1487 = vsel %vm129, %v974, %v1477
    %v1488 = vsel %vm805, %v1487, %v1481
    %v1489 = vsel %vm807, %v1488, %v1485
    %v1490 = vpack.c.bf16 %v1489, %v808
    %v1491 = vld [vmem:[%s3] sm:$0xf]
    %v1492 = vld [vmem:[%s3 + $0x4] sm:$0xf]
    %v1493 = vld [vmem:[%s3 + $0x8] sm:$0xf]
    %v1494 = vld [vmem:[%s3 + $0xc] sm:$0xf]
    %v1495 = vld [vmem:[%s8] sm:$0x1]
    %v1496 = vld [vmem:[%s9] sm:$0x1]
    %v1497 = vld [vmem:[%s10] sm:$0x1]
    %v1498 = vld [vmem:[%s11] sm:$0x1]
    %v1499 = vld [vmem:[%s5] sm:$0x1]
    %v1500 = vld [vmem:[%s7] sm:$0x1]
    %v1505 = vunpack.c.l.b16 %v1491
    %v1506 = vunpack.c.l.b16 %v1492
    %v1507 = vunpack.c.l.b16 %v1493
    %v1508 = vunpack.c.l.b16 %v1494
    %v1509 = vpack.c.b16 %v1506, %v1505
    %v1510 = vpack.c.b16 %v1508, %v1507
    %v1514 = vsel %vm78, %v1490, 0
    %1516 = vmatprep.subr.bf16.mxu0 0
    %1517 = vmatpush1.bf16.msra.mxu0 %v1509
    %1518 = vmatprep.subr.bf16.mxu0 0
    %1519 = vmatpush1.bf16.msra.mxu0 %v1510
    %1520 = vmatprep.subr.bf16.mxu0 0
    %1521 = vmatpush1.bf16.msra.mxu0 0
    %1522 = vmatprep.subr.bf16.mxu0 0
    %1523 = vmatpush1.bf16.msra.mxu0 0
    %1524 = vmatprep.subr.bf16.mxu0 0
    %1525 = vmatpush1.bf16.msra.mxu0 0
    %1526 = vmatprep.subr.bf16.mxu0 0
    %1527 = vmatpush1.bf16.msra.mxu0 0
    %1528 = vmatprep.subr.bf16.mxu0 0
    %1529 = vmatpush1.bf16.msra.mxu0 0
    %1530 = vmatprep.subr.bf16.mxu0 0
    %1531 = vmatpush1.bf16.msra.mxu0 0
    %1532 = vmatprep.subr.bf16.mxu0 0
    %1533 = vmatpush1.bf16.msra.mxu0 0
    %1534 = vmatprep.subr.bf16.mxu0 0
    %1535 = vmatpush1.bf16.msra.mxu0 0
    %1536 = vmatprep.subr.bf16.mxu0 0
    %1537 = vmatpush1.bf16.msra.mxu0 0
    %1538 = vmatprep.subr.bf16.mxu0 0
    %1539 = vmatpush1.bf16.msra.mxu0 0
    %1540 = vmatprep.subr.bf16.mxu0 0
    %1541 = vmatpush1.bf16.msra.mxu0 0
    %1542 = vmatprep.subr.bf16.mxu0 0
    %1543 = vmatpush1.bf16.msra.mxu0 0
    %1544 = vmatprep.subr.bf16.mxu0 0
    %1545 = vmatpush1.bf16.msra.mxu0 0
    %1546 = vmatprep.subr.bf16.mxu0 0
    %1547 = vmatpush1.bf16.msra.mxu0 0
    %1548 = vmatprep.mubr.bf16.mxu0 0
    %1549 = vmatmul.mubr.bf16.gmra.mrb[0].mxu0 %v1514
    %v1550 = vpop.f32.mrb[0].mxu0
    %v1551 = vadd.f32 %v59, %v1550
    %v1552 = vpop.f32.mrb[0].mxu0
    %v1553 = vpop.f32.mrb[0].mxu0
    %v1554 = vadd.f32 %v60, %v1553
    %v1555 = vpop.f32.mrb[0].mxu0
    %1556 = vdwg.mxu0
    %v1557 = vsel %vm78, %v1551, 0.0
    %1558 = vadd.xlane.f32.xlu0 %v1557
    %v1559 = vpop.xlane.xlu0 %1558
    %v1560 = vsel %vm78, %v1554, 0.0
    %1561 = vadd.xlane.f32.xlu0 %v1560
    %v1562 = vpop.xlane.xlu0 %1561
    %v1563 = vrcp.pop 32.0
    %v1564 = vmul.f32 %v1559, %v1563
    %v1565 = vmul.f32 %v1562, %v1563
    %v1566 = vsub.f32 %v1551, %v1564
    %v1567 = vsub.f32 %v1554, %v1565
    %v1568 = vmul.f32 %v1566, %v1566
    %v1569 = vmul.f32 %v1567, %v1567
    %v1570 = vsel %vm78, %v1568, 0.0
    %1571 = vadd.xlane.f32.xlu0 %v1570
    %v1572 = vpop.xlane.xlu0 %1571
    %v1573 = vsel %vm78, %v1569, 0.0
    %1574 = vadd.xlane.f32.xlu0 %v1573
    %v1575 = vpop.xlane.xlu0 %1574
    %v1576 = vmul.f32 %v1572, %v1563
    %v1577 = vmul.f32 %v1575, %v1563
    %v1578 = vadd.f32 %v1576, 1e-05
    %v1579 = vadd.f32 %v1577, 1e-05
    %v1580 = vrsqrt.pop %v1578
    %v1581 = vrsqrt.pop %v1579
    %v1582 = vmul.f32 %v1566, %v1580
    %v1583 = vmul.f32 %v1567, %v1581
    %v1585 = vlaneseq
    %v1586 = vshrl.u32 %v1585, 7
    %v1587 = vsub.s32 0, %v1586
    %v1588 = vrot.slane %v1495, %v1587
    %v1590 = vmul.f32 %v1582, %v1588
    %v1591 = vmul.f32 %v1583, %v1588
    %v1593 = vlaneseq
    %v1594 = vshrl.u32 %v1593, 7
    %v1595 = vsub.s32 0, %v1594
    %v1596 = vrot.slane %v1496, %v1595
    %v1598 = vadd.f32 %v1590, %v1596
    %v1599 = vadd.f32 %v1591, %v1596
    %v1600 = vpack.c.bf16 %v1599, %v1598
    %v1601 = vld [vmem:[#allocation4] sm:$0xf]
    %v1602 = vld [vmem:[#allocation4 + $0x4] sm:$0xf]
    %v1603 = vld [vmem:[#allocation4 + $0x8] sm:$0xf]
    %v1604 = vld [vmem:[#allocation4 + $0xc] sm:$0xf]
    %v1606 = vlaneseq
    %v1607 = vshrl.u32 %v1606, 7
    %v1608 = vsub.s32 0, %v1607
    %v1609 = vrot.slane %v1499, %v1608
    %v1615 = vunpack.c.l.b16 %v1601
    %v1616 = vunpack.c.l.b16 %v1602
    %v1617 = vunpack.c.l.b16 %v1603
    %v1618 = vunpack.c.l.b16 %v1604
    %v1619 = vpack.c.b16 %v1616, %v1615
    %v1620 = vpack.c.b16 %v1618, %v1617
    %v1624 = vsel %vm78, %v1600, 0
    %1626 = vmatprep.subr.bf16.mxu0 0
    %1627 = vmatpush1.bf16.msra.mxu0 %v1619
    %1628 = vmatprep.subr.bf16.mxu0 0
    %1629 = vmatpush1.bf16.msra.mxu0 %v1620
    %1630 = vmatprep.subr.bf16.mxu0 0
    %1631 = vmatpush1.bf16.msra.mxu0 0
    %1632 = vmatprep.subr.bf16.mxu0 0
    %1633 = vmatpush1.bf16.msra.mxu0 0
    %1634 = vmatprep.subr.bf16.mxu0 0
    %1635 = vmatpush1.bf16.msra.mxu0 0
    %1636 = vmatprep.subr.bf16.mxu0 0
    %1637 = vmatpush1.bf16.msra.mxu0 0
    %1638 = vmatprep.subr.bf16.mxu0 0
    %1639 = vmatpush1.bf16.msra.mxu0 0
    %1640 = vmatprep.subr.bf16.mxu0 0
    %1641 = vmatpush1.bf16.msra.mxu0 0
    %1642 = vmatprep.subr.bf16.mxu0 0
    %1643 = vmatpush1.bf16.msra.mxu0 0
    %1644 = vmatprep.subr.bf16.mxu0 0
    %1645 = vmatpush1.bf16.msra.mxu0 0
    %1646 = vmatprep.subr.bf16.mxu0 0
    %1647 = vmatpush1.bf16.msra.mxu0 0
    %1648 = vmatprep.subr.bf16.mxu0 0
    %1649 = vmatpush1.bf16.msra.mxu0 0
    %1650 = vmatprep.subr.bf16.mxu0 0
    %1651 = vmatpush1.bf16.msra.mxu0 0
    %1652 = vmatprep.subr.bf16.mxu0 0
    %1653 = vmatpush1.bf16.msra.mxu0 0
    %1654 = vmatprep.subr.bf16.mxu0 0
    %1655 = vmatpush1.bf16.msra.mxu0 0
    %1656 = vmatprep.subr.bf16.mxu0 0
    %1657 = vmatpush1.bf16.msra.mxu0 0
    %1658 = vmatprep.mubr.bf16.mxu0 0
    %1659 = vmatmul.mubr.bf16.gmra.mrb[0].mxu0 %v1624
    %v1660 = vpop.f32.mrb[0].mxu0
    %v1661 = vadd.f32 %v1609, %v1660
    %v1662 = vpop.f32.mrb[0].mxu0
    %v1663 = vpop.f32.mrb[0].mxu0
    %v1664 = vadd.f32 %v1609, %v1663
    %v1665 = vpop.f32.mrb[0].mxu0
    %1666 = vdwg.mxu0
    %v1667 = vmax.f32 %v1661, 0.0
    %v1668 = vmax.f32 %v1664, 0.0
    %v1669 = vpack.c.bf16 %v1668, %v1667
    %v1670 = vld [vmem:[%s6] sm:$0xf]
    %v1671 = vld [vmem:[%s6 + $0x4] sm:$0xf]
    %v1672 = vld [vmem:[%s6 + $0x8] sm:$0xf]
    %v1673 = vld [vmem:[%s6 + $0xc] sm:$0xf]
    %v1674 = vld [vmem:[%s6 + $0x10] sm:$0xf]
    %v1675 = vld [vmem:[%s6 + $0x14] sm:$0xf]
    %v1676 = vld [vmem:[%s6 + $0x18] sm:$0xf]
    %v1677 = vld [vmem:[%s6 + $0x1c] sm:$0xf]
    %v1679 = vlaneseq
    %v1680 = vshrl.u32 %v1679, 7
    %v1681 = vsub.s32 0, %v1680
    %v1682 = vrot.slane %v1500, %v1681
    %v1692 = vunpack.c.l.b16 %v1670
    %v1693 = vunpack.c.l.b16 %v1671
    %v1694 = vunpack.c.l.b16 %v1672
    %v1695 = vunpack.c.l.b16 %v1673
    %v1696 = vunpack.c.l.b16 %v1674
    %v1697 = vunpack.c.l.b16 %v1675
    %v1698 = vunpack.c.l.b16 %v1676
    %v1699 = vunpack.c.l.b16 %v1677
    %v1700 = vpack.c.b16 %v1693, %v1692
    %v1701 = vpack.c.b16 %v1695, %v1694
    %v1702 = vpack.c.b16 %v1697, %v1696
    %v1703 = vpack.c.b16 %v1699, %v1698
    %vm1708 = vcmask 523264
    %v1710 = vsel %vm1708, %v1669, 0
    %1712 = vmatprep.subr.bf16.mxu0 0
    %1713 = vmatpush1.bf16.msra.mxu0 %v1700
    %1714 = vmatprep.subr.bf16.mxu0 0
    %1715 = vmatpush1.bf16.msra.mxu0 %v1701
    %1716 = vmatprep.subr.bf16.mxu0 0
    %1717 = vmatpush1.bf16.msra.mxu0 %v1702
    %1718 = vmatprep.subr.bf16.mxu0 0
    %1719 = vmatpush1.bf16.msra.mxu0 %v1703
    %1720 = vmatprep.subr.bf16.mxu0 0
    %1721 = vmatpush1.bf16.msra.mxu0 0
    %1722 = vmatprep.subr.bf16.mxu0 0
    %1723 = vmatpush1.bf16.msra.mxu0 0
    %1724 = vmatprep.subr.bf16.mxu0 0
    %1725 = vmatpush1.bf16.msra.mxu0 0
    %1726 = vmatprep.subr.bf16.mxu0 0
    %1727 = vmatpush1.bf16.msra.mxu0 0
    %1728 = vmatprep.subr.bf16.mxu0 0
    %1729 = vmatpush1.bf16.msra.mxu0 0
    %1730 = vmatprep.subr.bf16.mxu0 0
    %1731 = vmatpush1.bf16.msra.mxu0 0
    %1732 = vmatprep.subr.bf16.mxu0 0
    %1733 = vmatpush1.bf16.msra.mxu0 0
    %1734 = vmatprep.subr.bf16.mxu0 0
    %1735 = vmatpush1.bf16.msra.mxu0 0
    %1736 = vmatprep.subr.bf16.mxu0 0
    %1737 = vmatpush1.bf16.msra.mxu0 0
    %1738 = vmatprep.subr.bf16.mxu0 0
    %1739 = vmatpush1.bf16.msra.mxu0 0
    %1740 = vmatprep.subr.bf16.mxu0 0
    %1741 = vmatpush1.bf16.msra.mxu0 0
    %1742 = vmatprep.subr.bf16.mxu0 0
    %1743 = vmatpush1.bf16.msra.mxu0 0
    %1744 = vmatprep.mubr.bf16.mxu0 0
    %1745 = vmatmul.mubr.bf16.gmra.mrb[0].mxu0 %v1710
    %v1746 = vpop.f32.mrb[0].mxu0
    %v1747 = vadd.f32 %v1682, %v1746
    %v1748 = vpop.f32.mrb[0].mxu0
    %v1749 = vpop.f32.mrb[0].mxu0
    %v1750 = vadd.f32 %v1682, %v1749
    %v1751 = vpop.f32.mrb[0].mxu0
    %1752 = vdwg.mxu0
    %v1753 = vadd.f32 %v1747, %v1598
    %v1754 = vadd.f32 %v1750, %v1599
    %v1755 = vsel %vm78, %v1753, 0.0
    %1756 = vadd.xlane.f32.xlu0 %v1755
    %v1757 = vpop.xlane.xlu0 %1756
    %v1758 = vsel %vm78, %v1754, 0.0
    %1759 = vadd.xlane.f32.xlu0 %v1758
    %v1760 = vpop.xlane.xlu0 %1759
    %v1761 = vmul.f32 %v1757, %v1563
    %v1762 = vmul.f32 %v1760, %v1563
    %v1763 = vsub.f32 %v1753, %v1761
    %v1764 = vsub.f32 %v1754, %v1762
    %v1765 = vmul.f32 %v1763, %v1763
    %v1766 = vmul.f32 %v1764, %v1764
    %v1767 = vsel %vm78, %v1765, 0.0
    %1768 = vadd.xlane.f32.xlu0 %v1767
    %v1769 = vpop.xlane.xlu0 %1768
    %v1770 = vsel %vm78, %v1766, 0.0
    %1771 = vadd.xlane.f32.xlu0 %v1770
    %v1772 = vpop.xlane.xlu0 %1771
    %v1773 = vmul.f32 %v1769, %v1563
    %v1774 = vmul.f32 %v1772, %v1563
    %v1775 = vadd.f32 %v1773, 1e-05
    %v1776 = vadd.f32 %v1774, 1e-05
    %v1777 = vrsqrt.pop %v1775
    %v1778 = vrsqrt.pop %v1776
    %v1779 = vmul.f32 %v1763, %v1777
    %v1780 = vmul.f32 %v1764, %v1778
    %v1782 = vlaneseq
    %v1783 = vshrl.u32 %v1782, 7
    %v1784 = vsub.s32 0, %v1783
    %v1785 = vrot.slane %v1497, %v1784
    %v1787 = vmul.f32 %v1779, %v1785
    %v1788 = vmul.f32 %v1780, %v1785
    %v1790 = vlaneseq
    %v1791 = vshrl.u32 %v1790, 7
    %v1792 = vsub.s32 0, %v1791
    %v1793 = vrot.slane %v1498, %v1792
    %v1795 = vadd.f32 %v1787, %v1793
    %v1796 = vadd.f32 %v1788, %v1793
    %1797 = vst.msk [vmem:[#allocation7] sm:$0xff] %vm78, %v1795
    %1798 = vst.msk [vmem:[#allocation7 + $0x8] sm:$0xff] %vm78, %v1796
    // Predicated region
    $region50: #{tpu_custom_call.1} parent=1 // pred_check
      _
    $region51: #{tpu_custom_call.1} parent=1 // pred_check_branch
      %1800 = sbr.rel (0) target = $region53
    $region52: #{tpu_custom_call.1} parent=1 // pred_region
      %s1802 = ssub.s32 256, 256
      %1803 = vsyncadd [#allocation6], %s1802
      %s1804 = sshll.u32 [#allocation7], 4
      %s1805 = int_to_ptr.vmem [resolvable:$true] %s1804
      %1810 = dma.vmem_to_hbm [thread:$0]  %s1805, 256, %s12, [#allocation6], 128, 128, 8
    $region53: #{tpu_custom_call.1} parent=1 // pred_fallthru
      _
    // Predicated region
    $region54: #{tpu_custom_call.1} parent=1 // pred_check
      _
    $region55: #{tpu_custom_call.1} parent=1 // pred_check_branch
      %1812 = sbr.rel (0) target = $region57
    $region56: #{tpu_custom_call.1} parent=1 // pred_region
      %1813 = dma.done [#allocation6], 256
    $region57: #{tpu_custom_call.1} parent=1 // pred_fallthru
      _
    %1814 = vsyncpa [#allocation5], 1
    %1815 = vsyncpa [#allocation6], 1

</llo_original>
